<compile_context>
chip_gen: v6e
topology: v6e:2x2x1
jax: 0.10.0
libtpu: 0.0.40
codegen_flags: <defaults>
</compile_context>

<pallas_src>
import functools
import math

import jax
import jax.numpy as jnp
from jax.experimental import pallas as pl
from jax.experimental.pallas import tpu as pltpu


# ----------------------- generation-aware sizing helpers -----------------------

def _vmem_capacity_bytes():
    try:
        info = pltpu.get_tpu_info()
        cap = int(getattr(info, "vmem_capacity_bytes"))
        if cap > 0:
            return cap
    except Exception:
        pass
    return 64 * 1024 * 1024          # conservative (v7x-sized) fallback


def _kernel_sizing(batch):
    """Pick (batch_block, interm_tile_target, vmem_limit) per TPU generation."""
    cap = _vmem_capacity_bytes()
    big_vmem = cap >= (100 << 20)                  # v5e / v6e (128 MiB) vs v7x (64 MiB)
    vmem_limit = int(cap * 3 // 4)                 # leave headroom for compiler scratch
    interm_target = 1024 if big_vmem else 512      # wi/wf streaming tile target
    bb_target = 4 if big_vmem else 2               # batch rows per grid step
    bb = 1
    for c in range(1, min(batch, bb_target) + 1):
        if batch % c == 0:
            bb = c
    return bb, interm_target, vmem_limit


def _pick_interm_tile(total, target):
    """Largest lane-aligned tile <= target that divides the intermediate dim."""
    if total <= target:
        return total
    for t in range(target, 0, -1):
        if total % t == 0 and t % 128 == 0:
            return t
    return total   # fallback: no streaming (only for odd, non-128-multiple I)


def _pick_q_tile(seq, target=256):
    """Largest sublane-aligned q-tile <= target that divides the sequence."""
    if seq <= target:
        return seq
    for t in range(target, 0, -1):
        if seq % t == 0 and t % 8 == 0:
            return t
    return seq


# ----------------------------- in-kernel helpers -----------------------------

def _layernorm(x, g, b, eps):
    mu = jnp.mean(x, axis=-1, keepdims=True)
    var = jnp.mean(jnp.square(x - mu), axis=-1, keepdims=True)
    return (x - mu) * jax.lax.rsqrt(var + eps) * g + b


def _gelu_exact(x):
    # nn.GELU() default: 0.5 * x * (1 + erf(x / sqrt(2)))
    return 0.5 * x * (1.0 + jax.lax.erf(x * (1.0 / math.sqrt(2.0))))


# ------------------------------- Pallas kernels -------------------------------

def emb_ln_kernel(x_ref, g_ref, b_ref, o_ref, *, eps):
    # Only used when num_hidden_layers == 0 (otherwise fused into layer 0).
    o_ref[0] = _layernorm(x_ref[0], g_ref[...], b_ref[...], eps)


def bert_layer_kernel(*refs, num_heads, head_dim, eps, compute_dtype,
                      fuse_input_ln, q_tile):
    """One encoder layer.  Grid = (batch blocks, intermediate-dim tiles).

    k == 0    : (optional embedding LN) + QKV + q-tiled attention + output dense
                + residual + LN1 -> h1 (f32) & h1 (bf16) scratch; first FFN chunk
                is written straight into the f32 accumulator.
    k  > 0    : acc += gelu(h1_bf16 @ wi[:, tile] + bi[tile]) @ wf[tile, :]
    k == last : out = LN2(acc + bf + h1)   (bf16 writeback)
    """
    if fuse_input_ln:
        (x_ref, mask_ref, ing_ref, inb_ref,
         wq_ref, bq_ref, wk_ref, bk_ref, wv_ref, bv_ref,
         wo_ref, bo_ref, g1_ref, b1_ref,
         wi_ref, bi_ref, wf_ref, bf_ref, g2_ref, b2_ref,
         out_ref, h1_scr, h1c_scr, acc_scr) = refs
    else:
        (x_ref, mask_ref,
         wq_ref, bq_ref, wk_ref, bk_ref, wv_ref, bv_ref,
         wo_ref, bo_ref, g1_ref, b1_ref,
         wi_ref, bi_ref, wf_ref, bf_ref, g2_ref, b2_ref,
         out_ref, h1_scr, h1c_scr, acc_scr) = refs
        ing_ref = inb_ref = None

    cdt = compute_dtype
    nh, hd = num_heads, head_dim
    Bb, S, H = x_ref.shape
    tq = q_tile
    n_qt = S // tq
    k_idx = pl.program_id(1)

    @pl.when(k_idx == 0)
    def _attention_block():
        x = x_ref[...].astype(jnp.float32)                    # (Bb, S, H)
        if fuse_input_ln:
            x = _layernorm(x, ing_ref[...], inb_ref[...], eps)
        xc = x.astype(cdt)
        mask = mask_ref[...]                                  # (Bb, 1, S) additive

        # Batched QKV projections over all Bb*S rows (one wide MXU matmul each),
        # bf16 x bf16 -> f32 accumulation, bias added in f32.
        x2 = xc.reshape(Bb * S, H)
        q = jnp.dot(x2, wq_ref[...], preferred_element_type=jnp.float32) + bq_ref[...]
        k = jnp.dot(x2, wk_ref[...], preferred_element_type=jnp.float32) + bk_ref[...]
        v = jnp.dot(x2, wv_ref[...], preferred_element_type=jnp.float32) + bv_ref[...]
        q4 = q.reshape(Bb, S, nh, hd)
        k4 = k.reshape(Bb, S, nh, hd)
        v4 = v.reshape(Bb, S, nh, hd)

        scale = 1.0 / math.sqrt(hd)
        for b in range(Bb):                                   # static, Bb <= 4
            qh = jnp.swapaxes(q4[b], 0, 1).astype(cdt)        # (nh, S, hd)
            kh = jnp.swapaxes(k4[b], 0, 1).astype(cdt)
            vh = jnp.swapaxes(v4[b], 0, 1).astype(cdt)
            mask_b = mask[b][None, :, :]                      # (1, 1, S)
            xb = x[b]                                         # (S, H)
            # Query tiling caps the transient score tensor at (nh, tq, S).
            # Keys/values are fully resident -> per-tile softmax is exact.
            for qt in range(n_qt):                            # static, small
                sl = slice(qt * tq, (qt + 1) * tq)
                s_t = jnp.einsum("nqd,nkd->nqk", qh[:, sl], kh,
                                 preferred_element_type=jnp.float32)
                s_t = s_t * scale + mask_b
                m = jnp.max(s_t, axis=-1, keepdims=True)
                p = jnp.exp(s_t - m)
                denom = jnp.sum(p, axis=-1, keepdims=True)
                p = p * pl.reciprocal(denom, approx=True)     # EUP slot
                ctx = jnp.einsum("nqk,nkd->nqd", p.astype(cdt), vh,
                                 preferred_element_type=jnp.float32)
                ctx = jnp.swapaxes(ctx, 0, 1).reshape(tq, nh * hd)
                attn = jnp.dot(ctx.astype(cdt), wo_ref[...],
                               preferred_element_type=jnp.float32) + bo_ref[...]
                h1_t = _layernorm(attn + xb[sl], g1_ref[...], b1_ref[...], eps)
                h1_scr[b, sl, :] = h1_t                       # f32 (residual / LN2)
                h1c_scr[b, sl, :] = h1_t.astype(cdt)          # bf16 (FFN matmul input)

    # ---- FFN chunk over the streamed intermediate dimension ----
    h1c = h1c_scr[...].reshape(Bb * S, H)                     # bf16, cast done once
    inter = _gelu_exact(
        jnp.dot(h1c, wi_ref[...], preferred_element_type=jnp.float32) + bi_ref[...])
    chunk = jnp.dot(inter.astype(cdt), wf_ref[...],
                    preferred_element_type=jnp.float32).reshape(Bb, S, H)

    @pl.when(k_idx == 0)
    def _init_acc():
        acc_scr[...] = chunk            # first chunk written directly (no zero + +=)

    @pl.when(k_idx > 0)
    def _accumulate():
        acc_scr[...] += chunk

    # Output block index is constant across k; writing only at the last k is
    # valid (writeback happens on block change / grid end) but intentionally so.
    @pl.when(k_idx == pl.num_programs(1) - 1)
    def _finalize():
        ffn = acc_scr[...] + bf_ref[...]
        out_ref[...] = _layernorm(ffn + h1_scr[...], g2_ref[...], b2_ref[...],
                                  eps).astype(out_ref.dtype)


def pooler_kernel(x_ref, w_ref, b_ref, o_ref, *, compute_dtype):
    o_ref[...] = jnp.tanh(
        jnp.dot(x_ref[...].astype(compute_dtype), w_ref[...],
                preferred_element_type=jnp.float32) + b_ref[...])


# ------------------------------- Python wrappers -------------------------------

def bert_layer_pallas(x, mask_add, L, cfg, input_ln=None,
                      compute_dtype=jnp.bfloat16, batch_block=1,
                      interm_target=512, vmem_limit=48 * 1024 * 1024):
    B, S, H = x.shape
    I = cfg["intermediate_size"]
    nh = cfg["num_attention_heads"]
    cdt = compute_dtype

    Bb = batch_block
    ti = _pick_interm_tile(I, interm_target)
    nk = I // ti
    tq = _pick_q_tile(S)

    kernel = functools.partial(
        bert_layer_kernel, num_heads=nh, head_dim=H // nh,
        eps=cfg["layer_norm_eps"], compute_dtype=cdt,
        fuse_input_ln=input_ln is not None, q_tile=tq)

    def const(shape):
        # Invariant weights: constant index_map -> DMA'd once, reused across grid.
        return pl.BlockSpec(shape, lambda b, k: (0,) * len(shape))

    def cast_w(w):
        # Weights should already be pre-cast (prepare_params); this is a no-op then.
        return w if w.dtype == cdt else w.astype(cdt)

    in_specs = [
        pl.BlockSpec((Bb, S, H), lambda b, k: (b, 0, 0)),   # hidden states (Bb rows)
        pl.BlockSpec((Bb, 1, S), lambda b, k: (b, 0, 0)),   # additive attention mask
    ]
    inputs = [x, mask_add]
    if input_ln is not None:                                 # fused embedding LayerNorm
        in_specs += [const((1, H)), const((1, H))]
        inputs += [input_ln[0], input_ln[1]]
    in_specs += [
        const((H, H)), const((1, H)),                        # query
        const((H, H)), const((1, H)),                        # key
        const((H, H)), const((1, H)),                        # value
        const((H, H)), const((1, H)),                        # attention output dense
        const((1, H)), const((1, H)),                        # LayerNorm 1
        pl.BlockSpec((H, ti), lambda b, k: (0, k)),          # wi tile (streamed over I)
        pl.BlockSpec((1, ti), lambda b, k: (0, k)),          # bi tile
        pl.BlockSpec((ti, H), lambda b, k: (k, 0)),          # wf tile (streamed over I)
        const((1, H)),                                       # bf
        const((1, H)), const((1, H)),                        # LayerNorm 2
    ]
    inputs += [
        cast_w(L["wq"]), L["bq"], cast_w(L["wk"]), L["bk"],
        cast_w(L["wv"]), L["bv"], cast_w(L["wo"]), L["bo"],
        L["g1"], L["b1"],
        cast_w(L["wi"]), L["bi"], cast_w(L["wf"]), L["bf"],
        L["g2"], L["b2"],
    ]

    return pl.pallas_call(
        kernel,
        out_shape=jax.ShapeDtypeStruct((B, S, H), cdt),      # bf16 inter-layer carry
        grid=(B // Bb, nk),
        in_specs=in_specs,
        out_specs=pl.BlockSpec((Bb, S, H), lambda b, k: (b, 0, 0)),
        scratch_shapes=[pltpu.VMEM((Bb, S, H), jnp.float32),   # h1 f32 (residual / LN2)
                        pltpu.VMEM((Bb, S, H), cdt),           # h1 bf16 (FFN matmul input)
                        pltpu.VMEM((Bb, S, H), jnp.float32)],  # FFN f32 accumulator
        compiler_params=pltpu.CompilerParams(
            dimension_semantics=("parallel", "arbitrary"),
            vmem_limit_bytes=vmem_limit),
    )(*inputs)
    # TODO(synk): cross-pallas_call prefetch of layer n+1 weights (P10 futures) and
    # single-buffering of the k==0-only attention weight blocks would further help
    # small-batch latency on v7x.


def bert_model_pallas(params, input_ids, attention_mask, token_type_ids, cfg,
                      compute_dtype=jnp.bfloat16):
    B, S = input_ids.shape
    H = cfg["hidden_size"]

    # Embedding gathers (glue; data-dependent gather stays in plain JAX).
    emb = (params["word_emb"][input_ids]
           + params["pos_emb"][:S][None, :, :]
           + params["type_emb"][token_type_ids])

    # extended_attention_mask = (1 - mask) * -10000, broadcast over query dim.
    mask_add = ((1.0 - attention_mask.astype(jnp.float32)) * -10000.0).reshape(B, 1, S)

    Bb, interm_target, vmem_limit = _kernel_sizing(B)

    layers = params["layers"]
    if layers:
        # Embedding LayerNorm fused into the first encoder-layer kernel.
        h = bert_layer_pallas(emb, mask_add, layers[0], cfg,
                              input_ln=(params["emb_ln_g"], params["emb_ln_b"]),
                              compute_dtype=compute_dtype, batch_block=Bb,
                              interm_target=interm_target, vmem_limit=vmem_limit)
        for L in layers[1:]:
            h = bert_layer_pallas(h, mask_add, L, cfg, compute_dtype=compute_dtype,
                                  batch_block=Bb, interm_target=interm_target,
                                  vmem_limit=vmem_limit)
        seq_out = h.astype(jnp.float32)
    else:
        h = pl.pallas_call(
            functools.partial(emb_ln_kernel, eps=cfg["layer_norm_eps"]),
            out_shape=jax.ShapeDtypeStruct((B, S, H), jnp.float32),
            grid=(B,),
            in_specs=[pl.BlockSpec((1, S, H), lambda b: (b, 0, 0)),
                      pl.BlockSpec((1, H), lambda b: (0, 0)),
                      pl.BlockSpec((1, H), lambda b: (0, 0))],
            out_specs=pl.BlockSpec((1, S, H), lambda b: (b, 0, 0)),
            compiler_params=pltpu.CompilerParams(dimension_semantics=("parallel",)),
        )(emb, params["emb_ln_g"], params["emb_ln_b"])
        seq_out = h

    first_token = h[:, 0, :]
    pool_w = params["pool_w"]
    if pool_w.dtype != compute_dtype:
        pool_w = pool_w.astype(compute_dtype)
    pooled = pl.pallas_call(
        functools.partial(pooler_kernel, compute_dtype=compute_dtype),
        out_shape=jax.ShapeDtypeStruct((B, H), jnp.float32),
    )(first_token, pool_w, params["pool_b"])
    return seq_out, pooled


# ------------------------------ parameter handling ------------------------------

def init_bert_params(key, cfg):
    std = cfg["initializer_range"]
    H, I = cfg["hidden_size"], cfg["intermediate_size"]
    n_needed = 3 + 1 + cfg["num_hidden_layers"] * 6
    keys = iter(jax.random.split(key, n_needed))

    def nrm(shape):
        return jax.random.normal(next(keys), shape, jnp.float32) * std

    params = dict(
        word_emb=nrm((cfg["vocab_size"], H)),
        pos_emb=nrm((cfg["max_position_embeddings"], H)),
        type_emb=nrm((cfg["type_vocab_size"], H)),
        emb_ln_g=jnp.ones((1, H), jnp.float32),
        emb_ln_b=jnp.zeros((1, H), jnp.float32),
        pool_w=nrm((H, H)),
        pool_b=jnp.zeros((1, H), jnp.float32),
        layers=[],
    )
    for _ in range(cfg["num_hidden_layers"]):
        params["layers"].append(dict(
            wq=nrm((H, H)), bq=jnp.zeros((1, H), jnp.float32),
            wk=nrm((H, H)), bk=jnp.zeros((1, H), jnp.float32),
            wv=nrm((H, H)), bv=jnp.zeros((1, H), jnp.float32),
            wo=nrm((H, H)), bo=jnp.zeros((1, H), jnp.float32),
            g1=jnp.ones((1, H), jnp.float32), b1=jnp.zeros((1, H), jnp.float32),
            wi=nrm((H, I)), bi=jnp.zeros((1, I), jnp.float32),
            wf=nrm((I, H)), bf=jnp.zeros((1, H), jnp.float32),
            g2=jnp.ones((1, H), jnp.float32), b2=jnp.zeros((1, H), jnp.float32),
        ))
    return params


def prepare_params(params, compute_dtype=jnp.bfloat16):
    """One-time bf16 cast of all matmul weights (biases / LN / embeddings stay f32)."""
    p = dict(params)
    p["pool_w"] = params["pool_w"].astype(compute_dtype)
    new_layers = []
    for L in params["layers"]:
        L2 = dict(L)
        for k in ("wq", "wk", "wv", "wo", "wi", "wf"):
            L2[k] = L[k].astype(compute_dtype)
        new_layers.append(L2)
    p["layers"] = new_layers
    return p


# ------------------------------ pure-JAX reference ------------------------------
# Mirrors the kernel's precision (bf16 matmul inputs, f32 accumulation, bf16
# inter-layer carry) so the comparison isolates kernel-logic errors.

def bert_reference(params, input_ids, attention_mask, token_type_ids, cfg,
                   compute_dtype=jnp.bfloat16):
    H = cfg["hidden_size"]
    nh = cfg["num_attention_heads"]
    hd = H // nh
    eps = cfg["layer_norm_eps"]
    B, S = input_ids.shape
    cdt = compute_dtype

    def mm(a, b):
        return jnp.dot(a.astype(cdt), b.astype(cdt), preferred_element_type=jnp.float32)

    def ln(x, g, b):
        mu = x.mean(-1, keepdims=True)
        var = ((x - mu) ** 2).mean(-1, keepdims=True)
        return (x - mu) / jnp.sqrt(var + eps) * g + b

    emb = (params["word_emb"][input_ids] + params["pos_emb"][:S][None]
           + params["type_emb"][token_type_ids])
    h = ln(emb, params["emb_ln_g"][0], params["emb_ln_b"][0])
    mask_add = (1.0 - attention_mask.astype(jnp.float32)) * -10000.0

    for li, L in enumerate(params["layers"]):
        if li > 0:
            h = h.astype(cdt).astype(jnp.float32)   # mirrors bf16 inter-layer carry
        q = mm(h, L["wq"]) + L["bq"][0]
        k = mm(h, L["wk"]) + L["bk"][0]
        v = mm(h, L["wv"]) + L["bv"][0]
        qh = q.reshape(B, S, nh, hd).transpose(0, 2, 1, 3)
        kh = k.reshape(B, S, nh, hd).transpose(0, 2, 1, 3)
        vh = v.reshape(B, S, nh, hd).transpose(0, 2, 1, 3)
        scores = jnp.einsum("bnqd,bnkd->bnqk", qh.astype(cdt), kh.astype(cdt),
                            preferred_element_type=jnp.float32) / math.sqrt(hd)
        scores = scores + mask_add[:, None, None, :]
        p = jax.nn.softmax(scores, axis=-1)
        ctx = jnp.einsum("bnqk,bnkd->bnqd", p.astype(cdt), vh.astype(cdt),
                         preferred_element_type=jnp.float32)
        ctx = ctx.transpose(0, 2, 1, 3).reshape(B, S, H)
        attn = mm(ctx, L["wo"]) + L["bo"][0]
        h1 = ln(attn + h, L["g1"][0], L["b1"][0])
        inter = _gelu_exact(mm(h1, L["wi"]) + L["bi"][0])
        ffn = mm(inter, L["wf"]) + L["bf"][0]
        h = ln(ffn + h1, L["g2"][0], L["b2"][0])

    if params["layers"]:
        h = h.astype(cdt).astype(jnp.float32)       # mirrors bf16 final layer output
    pooled = jnp.tanh(mm(h[:, 0], params["pool_w"]) + params["pool_b"][0])
    return h, pooled


# ------------------------------------ main ------------------------------------

if __name__ == "__main__":
    cfg = dict(
        vocab_size=64,
        hidden_size=32,
        num_hidden_layers=2,
        num_attention_heads=2,
        intermediate_size=64,
        max_position_embeddings=16,
        type_vocab_size=2,
        layer_norm_eps=1e-12,
        initializer_range=0.02,
        pad_token_id=0,
    )

    key = jax.random.PRNGKey(0)
    pkey, ikey = jax.random.split(key)
    params = init_bert_params(pkey, cfg)
    run_params = prepare_params(params)   # one-time bf16 weight cast

    B, S = 2, 8
    input_ids = jax.random.randint(ikey, (B, S), 0, cfg["vocab_size"], dtype=jnp.int32)
    attention_mask = jnp.ones((B, S), jnp.float32).at[1, 6:].set(0.0)
    token_type_ids = jnp.zeros((B, S), jnp.int32)

    seq_out, pooled = bert_model_pallas(run_params, input_ids, attention_mask,
                                        token_type_ids, cfg)
    jax.block_until_ready((seq_out, pooled))

    ref_seq, ref_pool = bert_reference(params, input_ids, attention_mask,
                                       token_type_ids, cfg)
    assert seq_out.shape == (B, S, cfg["hidden_size"])
    assert pooled.shape == (B, cfg["hidden_size"])
    # Tolerance covers the approximate-reciprocal softmax normalization,
    # accumulation-order differences and the (mirrored) bf16 inter-layer carry.
    assert jnp.allclose(seq_out, ref_seq, atol=1e-2, rtol=1e-2), \
        float(jnp.max(jnp.abs(seq_out - ref_seq)))
    assert jnp.allclose(pooled, ref_pool, atol=1e-2, rtol=1e-2), \
        float(jnp.max(jnp.abs(pooled - ref_pool)))

    print("KERNEL_OK")
</pallas_src>

<mosaic_0001>
module attributes {stable_mosaic.version = 11 : i64} {
  func.func @bert_layer_kernel(%arg0: i32, %arg1: i32, %arg2: memref<2x8x32xf32, #tpu.memory_space<vmem>>, %arg3: memref<2x1x8xf32, #tpu.memory_space<vmem>>, %arg4: memref<1x32xf32, #tpu.memory_space<vmem>>, %arg5: memref<1x32xf32, #tpu.memory_space<vmem>>, %arg6: memref<32x32xbf16, #tpu.memory_space<vmem>>, %arg7: memref<1x32xf32, #tpu.memory_space<vmem>>, %arg8: memref<32x32xbf16, #tpu.memory_space<vmem>>, %arg9: memref<1x32xf32, #tpu.memory_space<vmem>>, %arg10: memref<32x32xbf16, #tpu.memory_space<vmem>>, %arg11: memref<1x32xf32, #tpu.memory_space<vmem>>, %arg12: memref<32x32xbf16, #tpu.memory_space<vmem>>, %arg13: memref<1x32xf32, #tpu.memory_space<vmem>>, %arg14: memref<1x32xf32, #tpu.memory_space<vmem>>, %arg15: memref<1x32xf32, #tpu.memory_space<vmem>>, %arg16: memref<32x64xbf16, #tpu.memory_space<vmem>>, %arg17: memref<1x64xf32, #tpu.memory_space<vmem>>, %arg18: memref<64x32xbf16, #tpu.memory_space<vmem>>, %arg19: memref<1x32xf32, #tpu.memory_space<vmem>>, %arg20: memref<1x32xf32, #tpu.memory_space<vmem>>, %arg21: memref<1x32xf32, #tpu.memory_space<vmem>>, %arg22: memref<2x8x32xbf16, #tpu.memory_space<vmem>>, %arg23: memref<2x8x32xf32, #tpu.memory_space<vmem>>, %arg24: memref<2x8x32xbf16, #tpu.memory_space<vmem>>, %arg25: memref<2x8x32xf32, #tpu.memory_space<vmem>>) attributes {dimension_semantics = [#tpu.dimension_semantics<parallel>, #tpu.dimension_semantics<arbitrary>], iteration_bounds = array<i64: 1, 1>, scalar_prefetch = 0 : i64, scratch_operands = 3 : i64, tpu.core_type = #tpu.core_type<tc>, window_params = [{transform_indices = @transform_0, window_bounds = array<i64: 2, 8, 32>}, {transform_indices = @transform_1, window_bounds = array<i64: 2, 1, 8>}, {pipeline_mode = #tpu.pipeline_mode<synchronous>, transform_indices = @transform_2, window_bounds = array<i64: 1, 32>}, {pipeline_mode = #tpu.pipeline_mode<synchronous>, transform_indices = @transform_3, window_bounds = array<i64: 1, 32>}, {pipeline_mode = #tpu.pipeline_mode<synchronous>, transform_indices = @transform_4, window_bounds = array<i64: 32, 32>}, {pipeline_mode = #tpu.pipeline_mode<synchronous>, transform_indices = @transform_5, window_bounds = array<i64: 1, 32>}, {pipeline_mode = #tpu.pipeline_mode<synchronous>, transform_indices = @transform_6, window_bounds = array<i64: 32, 32>}, {pipeline_mode = #tpu.pipeline_mode<synchronous>, transform_indices = @transform_7, window_bounds = array<i64: 1, 32>}, {pipeline_mode = #tpu.pipeline_mode<synchronous>, transform_indices = @transform_8, window_bounds = array<i64: 32, 32>}, {pipeline_mode = #tpu.pipeline_mode<synchronous>, transform_indices = @transform_9, window_bounds = array<i64: 1, 32>}, {pipeline_mode = #tpu.pipeline_mode<synchronous>, transform_indices = @transform_10, window_bounds = array<i64: 32, 32>}, {pipeline_mode = #tpu.pipeline_mode<synchronous>, transform_indices = @transform_11, window_bounds = array<i64: 1, 32>}, {pipeline_mode = #tpu.pipeline_mode<synchronous>, transform_indices = @transform_12, window_bounds = array<i64: 1, 32>}, {pipeline_mode = #tpu.pipeline_mode<synchronous>, transform_indices = @transform_13, window_bounds = array<i64: 1, 32>}, {transform_indices = @transform_14, window_bounds = array<i64: 32, 64>}, {transform_indices = @transform_15, window_bounds = array<i64: 1, 64>}, {transform_indices = @transform_16, window_bounds = array<i64: 64, 32>}, {pipeline_mode = #tpu.pipeline_mode<synchronous>, transform_indices = @transform_17, window_bounds = array<i64: 1, 32>}, {pipeline_mode = #tpu.pipeline_mode<synchronous>, transform_indices = @transform_18, window_bounds = array<i64: 1, 32>}, {pipeline_mode = #tpu.pipeline_mode<synchronous>, transform_indices = @transform_19, window_bounds = array<i64: 1, 32>}, {transform_indices = @transform_20, window_bounds = array<i64: 2, 8, 32>}]} {
    %c0_i32 = arith.constant 0 : i32
    %0 = arith.cmpi eq, %arg1, %c0_i32 : i32
    %1 = arith.extui %0 : i1 to i32
    %c0_i32_0 = arith.constant 0 : i32
    %2 = arith.cmpi ne, %1, %c0_i32_0 : i32
    scf.if %2 {
      %c0_19 = arith.constant 0 : index
      %c0_20 = arith.constant 0 : index
      %c0_21 = arith.constant 0 : index
      %31 = vector.load %arg2[%c0_19, %c0_20, %c0_21] : memref<2x8x32xf32, #tpu.memory_space<vmem>>, vector<2x8x32xf32>
      %c0_22 = arith.constant 0 : index
      %c0_23 = arith.constant 0 : index
      %32 = vector.load %arg4[%c0_22, %c0_23] : memref<1x32xf32, #tpu.memory_space<vmem>>, vector<1x32xf32>
      %c0_24 = arith.constant 0 : index
      %c0_25 = arith.constant 0 : index
      %33 = vector.load %arg5[%c0_24, %c0_25] : memref<1x32xf32, #tpu.memory_space<vmem>>, vector<1x32xf32>
      %cst_26 = arith.constant dense<0.000000e+00> : vector<2x8xf32>
      %34 = vector.multi_reduction <add>, %31, %cst_26 [2] : vector<2x8x32xf32> to vector<2x8xf32>
      %35 = vector.shape_cast %34 : vector<2x8xf32> to vector<2x8x1xf32>
      %cst_27 = arith.constant 3.200000e+01 : f32
      %36 = vector.broadcast %cst_27 : f32 to vector<2x8x1xf32>
      %37 = arith.divf %35, %36 : vector<2x8x1xf32>
      %38 = vector.broadcast %37 : vector<2x8x1xf32> to vector<2x8x32xf32>
      %39 = arith.subf %31, %38 : vector<2x8x32xf32>
      %40 = arith.mulf %39, %39 : vector<2x8x32xf32>
      %cst_28 = arith.constant dense<0.000000e+00> : vector<2x8xf32>
      %41 = vector.multi_reduction <add>, %40, %cst_28 [2] : vector<2x8x32xf32> to vector<2x8xf32>
      %42 = vector.shape_cast %41 : vector<2x8xf32> to vector<2x8x1xf32>
      %cst_29 = arith.constant 3.200000e+01 : f32
      %43 = vector.broadcast %cst_29 : f32 to vector<2x8x1xf32>
      %44 = arith.divf %42, %43 : vector<2x8x1xf32>
      %45 = vector.broadcast %37 : vector<2x8x1xf32> to vector<2x8x32xf32>
      %46 = arith.subf %31, %45 : vector<2x8x32xf32>
      %cst_30 = arith.constant 9.99999996E-13 : f32
      %47 = vector.broadcast %cst_30 : f32 to vector<2x8x1xf32>
      %48 = arith.addf %44, %47 : vector<2x8x1xf32>
      %49 = math.rsqrt %48 : vector<2x8x1xf32>
      %50 = vector.broadcast %49 : vector<2x8x1xf32> to vector<2x8x32xf32>
      %51 = arith.mulf %46, %50 : vector<2x8x32xf32>
      %52 = vector.shape_cast %32 : vector<1x32xf32> to vector<1x1x32xf32>
      %53 = vector.broadcast %52 : vector<1x1x32xf32> to vector<2x8x32xf32>
      %54 = arith.mulf %51, %53 : vector<2x8x32xf32>
      %55 = vector.shape_cast %33 : vector<1x32xf32> to vector<1x1x32xf32>
      %56 = vector.broadcast %55 : vector<1x1x32xf32> to vector<2x8x32xf32>
      %57 = arith.addf %54, %56 : vector<2x8x32xf32>
      %58 = arith.truncf %57 : vector<2x8x32xf32> to vector<2x8x32xbf16>
      %c0_31 = arith.constant 0 : index
      %c0_32 = arith.constant 0 : index
      %c0_33 = arith.constant 0 : index
      %59 = vector.load %arg3[%c0_31, %c0_32, %c0_33] : memref<2x1x8xf32, #tpu.memory_space<vmem>>, vector<2x1x8xf32>
      %60 = vector.shape_cast %58 : vector<2x8x32xbf16> to vector<16x32xbf16>
      %c0_34 = arith.constant 0 : index
      %c0_35 = arith.constant 0 : index
      %61 = vector.load %arg6[%c0_34, %c0_35] : memref<32x32xbf16, #tpu.memory_space<vmem>>, vector<32x32xbf16>
      %cst_36 = arith.constant dense<0.000000e+00> : vector<16x32xf32>
      %62 = tpu.matmul %60, %61, %cst_36 {dimension_numbers = #tpu.dot_dimension_numbers<[1], [0], [0], [1], [0, 0, 1, 1], [], []>} : vector<16x32xbf16>, vector<32x32xbf16>, vector<16x32xf32> -> vector<16x32xf32>
      %c0_37 = arith.constant 0 : index
      %c0_38 = arith.constant 0 : index
      %63 = vector.load %arg7[%c0_37, %c0_38] : memref<1x32xf32, #tpu.memory_space<vmem>>, vector<1x32xf32>
      %64 = vector.broadcast %63 : vector<1x32xf32> to vector<16x32xf32>
      %65 = arith.addf %62, %64 : vector<16x32xf32>
      %c0_39 = arith.constant 0 : index
      %c0_40 = arith.constant 0 : index
      %66 = vector.load %arg8[%c0_39, %c0_40] : memref<32x32xbf16, #tpu.memory_space<vmem>>, vector<32x32xbf16>
      %cst_41 = arith.constant dense<0.000000e+00> : vector<16x32xf32>
      %67 = tpu.matmul %60, %66, %cst_41 {dimension_numbers = #tpu.dot_dimension_numbers<[1], [0], [0], [1], [0, 0, 1, 1], [], []>} : vector<16x32xbf16>, vector<32x32xbf16>, vector<16x32xf32> -> vector<16x32xf32>
      %c0_42 = arith.constant 0 : index
      %c0_43 = arith.constant 0 : index
      %68 = vector.load %arg9[%c0_42, %c0_43] : memref<1x32xf32, #tpu.memory_space<vmem>>, vector<1x32xf32>
      %69 = vector.broadcast %68 : vector<1x32xf32> to vector<16x32xf32>
      %70 = arith.addf %67, %69 : vector<16x32xf32>
      %c0_44 = arith.constant 0 : index
      %c0_45 = arith.constant 0 : index
      %71 = vector.load %arg10[%c0_44, %c0_45] : memref<32x32xbf16, #tpu.memory_space<vmem>>, vector<32x32xbf16>
      %cst_46 = arith.constant dense<0.000000e+00> : vector<16x32xf32>
      %72 = tpu.matmul %60, %71, %cst_46 {dimension_numbers = #tpu.dot_dimension_numbers<[1], [0], [0], [1], [0, 0, 1, 1], [], []>} : vector<16x32xbf16>, vector<32x32xbf16>, vector<16x32xf32> -> vector<16x32xf32>
      %c0_47 = arith.constant 0 : index
      %c0_48 = arith.constant 0 : index
      %73 = vector.load %arg11[%c0_47, %c0_48] : memref<1x32xf32, #tpu.memory_space<vmem>>, vector<1x32xf32>
      %74 = vector.broadcast %73 : vector<1x32xf32> to vector<16x32xf32>
      %75 = arith.addf %72, %74 : vector<16x32xf32>
      %76 = vector.shape_cast %65 : vector<16x32xf32> to vector<2x8x2x16xf32>
      %77 = vector.shape_cast %70 : vector<16x32xf32> to vector<2x8x2x16xf32>
      %78 = vector.shape_cast %75 : vector<16x32xf32> to vector<2x8x2x16xf32>
      %79 = vector.extract_strided_slice %76 {offsets = [0, 0, 0, 0], sizes = [1, 8, 2, 16], strides = [1, 1, 1, 1]} : vector<2x8x2x16xf32> to vector<1x8x2x16xf32>
      %80 = vector.shape_cast %79 : vector<1x8x2x16xf32> to vector<8x2x16xf32>
      %81 = tpu.transpose %80, [1, 0, 2] : vector<8x2x16xf32> -> vector<2x8x16xf32>
      %82 = arith.truncf %81 : vector<2x8x16xf32> to vector<2x8x16xbf16>
      %83 = vector.extract_strided_slice %77 {offsets = [0, 0, 0, 0], sizes = [1, 8, 2, 16], strides = [1, 1, 1, 1]} : vector<2x8x2x16xf32> to vector<1x8x2x16xf32>
      %84 = vector.shape_cast %83 : vector<1x8x2x16xf32> to vector<8x2x16xf32>
      %85 = tpu.transpose %84, [1, 0, 2] : vector<8x2x16xf32> -> vector<2x8x16xf32>
      %86 = arith.truncf %85 : vector<2x8x16xf32> to vector<2x8x16xbf16>
      %87 = vector.extract_strided_slice %78 {offsets = [0, 0, 0, 0], sizes = [1, 8, 2, 16], strides = [1, 1, 1, 1]} : vector<2x8x2x16xf32> to vector<1x8x2x16xf32>
      %88 = vector.shape_cast %87 : vector<1x8x2x16xf32> to vector<8x2x16xf32>
      %89 = tpu.transpose %88, [1, 0, 2] : vector<8x2x16xf32> -> vector<2x8x16xf32>
      %90 = arith.truncf %89 : vector<2x8x16xf32> to vector<2x8x16xbf16>
      %91 = vector.extract_strided_slice %59 {offsets = [0, 0, 0], sizes = [1, 1, 8], strides = [1, 1, 1]} : vector<2x1x8xf32> to vector<1x1x8xf32>
      %92 = vector.shape_cast %91 : vector<1x1x8xf32> to vector<1x8xf32>
      %93 = vector.shape_cast %92 : vector<1x8xf32> to vector<1x1x8xf32>
      %94 = vector.extract_strided_slice %57 {offsets = [0, 0, 0], sizes = [1, 8, 32], strides = [1, 1, 1]} : vector<2x8x32xf32> to vector<1x8x32xf32>
      %95 = vector.shape_cast %94 : vector<1x8x32xf32> to vector<8x32xf32>
      "tpu.trace_start"() <{level = 10 : i32, message = "nqd,nkd->nqk"}> : () -> ()
      %cst_49 = arith.constant dense<0.000000e+00> : vector<2x8x8xf32>
      %96 = tpu.matmul %82, %86, %cst_49 {dimension_numbers = #tpu.dot_dimension_numbers<[2], [2], [1], [1], [0, 0, 0, 1, 1, 1], [0], [0]>} : vector<2x8x16xbf16>, vector<2x8x16xbf16>, vector<2x8x8xf32> -> vector<2x8x8xf32>
      "tpu.trace_stop"() : () -> ()
      %cst_50 = arith.constant 2.500000e-01 : f32
      %97 = vector.broadcast %cst_50 : f32 to vector<2x8x8xf32>
      %98 = arith.mulf %96, %97 : vector<2x8x8xf32>
      %99 = vector.broadcast %93 : vector<1x1x8xf32> to vector<2x8x8xf32>
      %100 = arith.addf %98, %99 : vector<2x8x8xf32>
      %cst_51 = arith.constant dense<0xFF800000> : vector<2x8xf32>
      %101 = vector.multi_reduction <maximumf>, %100, %cst_51 [2] : vector<2x8x8xf32> to vector<2x8xf32>
      %102 = vector.shape_cast %101 : vector<2x8xf32> to vector<2x8x1xf32>
      %103 = vector.broadcast %102 : vector<2x8x1xf32> to vector<2x8x8xf32>
      %104 = arith.subf %100, %103 : vector<2x8x8xf32>
      %105 = math.exp %104 : vector<2x8x8xf32>
      %cst_52 = arith.constant dense<0.000000e+00> : vector<2x8xf32>
      %106 = vector.multi_reduction <add>, %105, %cst_52 [2] : vector<2x8x8xf32> to vector<2x8xf32>
      %107 = vector.shape_cast %106 : vector<2x8xf32> to vector<2x8x1xf32>
      %108 = tpu.reciprocal %107 {approx = true} : vector<2x8x1xf32> -> vector<2x8x1xf32>
      %109 = vector.broadcast %108 : vector<2x8x1xf32> to vector<2x8x8xf32>
      %110 = arith.mulf %105, %109 : vector<2x8x8xf32>
      %111 = arith.truncf %110 : vector<2x8x8xf32> to vector<2x8x8xbf16>
      "tpu.trace_start"() <{level = 10 : i32, message = "nqk,nkd->nqd"}> : () -> ()
      %cst_53 = arith.constant dense<0.000000e+00> : vector<2x8x16xf32>
      %112 = tpu.matmul %111, %90, %cst_53 {dimension_numbers = #tpu.dot_dimension_numbers<[2], [1], [1], [2], [0, 0, 0, 1, 1, 2], [0], [0]>} : vector<2x8x8xbf16>, vector<2x8x16xbf16>, vector<2x8x16xf32> -> vector<2x8x16xf32>
      "tpu.trace_stop"() : () -> ()
      %113 = tpu.transpose %112, [1, 0, 2] : vector<2x8x16xf32> -> vector<8x2x16xf32>
      %114 = vector.shape_cast %113 : vector<8x2x16xf32> to vector<8x32xf32>
      %115 = arith.truncf %114 : vector<8x32xf32> to vector<8x32xbf16>
      %c0_54 = arith.constant 0 : index
      %c0_55 = arith.constant 0 : index
      %116 = vector.load %arg12[%c0_54, %c0_55] : memref<32x32xbf16, #tpu.memory_space<vmem>>, vector<32x32xbf16>
      %cst_56 = arith.constant dense<0.000000e+00> : vector<8x32xf32>
      %117 = tpu.matmul %115, %116, %cst_56 {dimension_numbers = #tpu.dot_dimension_numbers<[1], [0], [0], [1], [0, 0, 1, 1], [], []>} : vector<8x32xbf16>, vector<32x32xbf16>, vector<8x32xf32> -> vector<8x32xf32>
      %c0_57 = arith.constant 0 : index
      %c0_58 = arith.constant 0 : index
      %118 = vector.load %arg13[%c0_57, %c0_58] : memref<1x32xf32, #tpu.memory_space<vmem>>, vector<1x32xf32>
      %119 = vector.broadcast %118 : vector<1x32xf32> to vector<8x32xf32>
      %120 = arith.addf %117, %119 : vector<8x32xf32>
      %121 = arith.addf %120, %95 : vector<8x32xf32>
      %c0_59 = arith.constant 0 : index
      %c0_60 = arith.constant 0 : index
      %122 = vector.load %arg14[%c0_59, %c0_60] : memref<1x32xf32, #tpu.memory_space<vmem>>, vector<1x32xf32>
      %c0_61 = arith.constant 0 : index
      %c0_62 = arith.constant 0 : index
      %123 = vector.load %arg15[%c0_61, %c0_62] : memref<1x32xf32, #tpu.memory_space<vmem>>, vector<1x32xf32>
      %cst_63 = arith.constant dense<0.000000e+00> : vector<8xf32>
      %124 = vector.multi_reduction <add>, %121, %cst_63 [1] : vector<8x32xf32> to vector<8xf32>
      %125 = vector.shape_cast %124 : vector<8xf32> to vector<8x1xf32>
      %cst_64 = arith.constant 3.200000e+01 : f32
      %126 = vector.broadcast %cst_64 : f32 to vector<8x1xf32>
      %127 = arith.divf %125, %126 : vector<8x1xf32>
      %128 = vector.broadcast %127 : vector<8x1xf32> to vector<8x32xf32>
      %129 = arith.subf %121, %128 : vector<8x32xf32>
      %130 = arith.mulf %129, %129 : vector<8x32xf32>
      %cst_65 = arith.constant dense<0.000000e+00> : vector<8xf32>
      %131 = vector.multi_reduction <add>, %130, %cst_65 [1] : vector<8x32xf32> to vector<8xf32>
      %132 = vector.shape_cast %131 : vector<8xf32> to vector<8x1xf32>
      %cst_66 = arith.constant 3.200000e+01 : f32
      %133 = vector.broadcast %cst_66 : f32 to vector<8x1xf32>
      %134 = arith.divf %132, %133 : vector<8x1xf32>
      %135 = vector.broadcast %127 : vector<8x1xf32> to vector<8x32xf32>
      %136 = arith.subf %121, %135 : vector<8x32xf32>
      %cst_67 = arith.constant 9.99999996E-13 : f32
      %137 = vector.broadcast %cst_67 : f32 to vector<8x1xf32>
      %138 = arith.addf %134, %137 : vector<8x1xf32>
      %139 = math.rsqrt %138 : vector<8x1xf32>
      %140 = vector.broadcast %139 : vector<8x1xf32> to vector<8x32xf32>
      %141 = arith.mulf %136, %140 : vector<8x32xf32>
      %142 = vector.broadcast %122 : vector<1x32xf32> to vector<8x32xf32>
      %143 = arith.mulf %141, %142 : vector<8x32xf32>
      %144 = vector.broadcast %123 : vector<1x32xf32> to vector<8x32xf32>
      %145 = arith.addf %143, %144 : vector<8x32xf32>
      %c0_68 = arith.constant 0 : index
      %c0_69 = arith.constant 0 : index
      %c0_70 = arith.constant 0 : index
      %146 = vector.load %arg23[%c0_68, %c0_69, %c0_70] : memref<2x8x32xf32, #tpu.memory_space<vmem>>, vector<1x8x32xf32>
      %147 = vector.shape_cast %146 : vector<1x8x32xf32> to vector<8x32xf32>
      %148 = vector.shape_cast %145 : vector<8x32xf32> to vector<1x8x32xf32>
      tpu.vector_store %arg23[%c0_68, %c0_69, %c0_70], %148 {strides = array<i32>} : memref<2x8x32xf32, #tpu.memory_space<vmem>>, vector<1x8x32xf32>,
      %149 = arith.truncf %145 : vector<8x32xf32> to vector<8x32xbf16>
      %c0_71 = arith.constant 0 : index
      %c0_72 = arith.constant 0 : index
      %c0_73 = arith.constant 0 : index
      %150 = vector.load %arg24[%c0_71, %c0_72, %c0_73] : memref<2x8x32xbf16, #tpu.memory_space<vmem>>, vector<1x8x32xbf16>
      %151 = vector.shape_cast %150 : vector<1x8x32xbf16> to vector<8x32xbf16>
      %152 = vector.shape_cast %149 : vector<8x32xbf16> to vector<1x8x32xbf16>
      tpu.vector_store %arg24[%c0_71, %c0_72, %c0_73], %152 {strides = array<i32>} : memref<2x8x32xbf16, #tpu.memory_space<vmem>>, vector<1x8x32xbf16>,
      %153 = vector.extract_strided_slice %76 {offsets = [1, 0, 0, 0], sizes = [1, 8, 2, 16], strides = [1, 1, 1, 1]} : vector<2x8x2x16xf32> to vector<1x8x2x16xf32>
      %154 = vector.shape_cast %153 : vector<1x8x2x16xf32> to vector<8x2x16xf32>
      %155 = tpu.transpose %154, [1, 0, 2] : vector<8x2x16xf32> -> vector<2x8x16xf32>
      %156 = arith.truncf %155 : vector<2x8x16xf32> to vector<2x8x16xbf16>
      %157 = vector.extract_strided_slice %77 {offsets = [1, 0, 0, 0], sizes = [1, 8, 2, 16], strides = [1, 1, 1, 1]} : vector<2x8x2x16xf32> to vector<1x8x2x16xf32>
      %158 = vector.shape_cast %157 : vector<1x8x2x16xf32> to vector<8x2x16xf32>
      %159 = tpu.transpose %158, [1, 0, 2] : vector<8x2x16xf32> -> vector<2x8x16xf32>
      %160 = arith.truncf %159 : vector<2x8x16xf32> to vector<2x8x16xbf16>
      %161 = vector.extract_strided_slice %78 {offsets = [1, 0, 0, 0], sizes = [1, 8, 2, 16], strides = [1, 1, 1, 1]} : vector<2x8x2x16xf32> to vector<1x8x2x16xf32>
      %162 = vector.shape_cast %161 : vector<1x8x2x16xf32> to vector<8x2x16xf32>
      %163 = tpu.transpose %162, [1, 0, 2] : vector<8x2x16xf32> -> vector<2x8x16xf32>
      %164 = arith.truncf %163 : vector<2x8x16xf32> to vector<2x8x16xbf16>
      %165 = vector.extract_strided_slice %59 {offsets = [1, 0, 0], sizes = [1, 1, 8], strides = [1, 1, 1]} : vector<2x1x8xf32> to vector<1x1x8xf32>
      %166 = vector.shape_cast %165 : vector<1x1x8xf32> to vector<1x8xf32>
      %167 = vector.shape_cast %166 : vector<1x8xf32> to vector<1x1x8xf32>
      %168 = vector.extract_strided_slice %57 {offsets = [1, 0, 0], sizes = [1, 8, 32], strides = [1, 1, 1]} : vector<2x8x32xf32> to vector<1x8x32xf32>
      %169 = vector.shape_cast %168 : vector<1x8x32xf32> to vector<8x32xf32>
      "tpu.trace_start"() <{level = 10 : i32, message = "nqd,nkd->nqk"}> : () -> ()
      %cst_74 = arith.constant dense<0.000000e+00> : vector<2x8x8xf32>
      %170 = tpu.matmul %156, %160, %cst_74 {dimension_numbers = #tpu.dot_dimension_numbers<[2], [2], [1], [1], [0, 0, 0, 1, 1, 1], [0], [0]>} : vector<2x8x16xbf16>, vector<2x8x16xbf16>, vector<2x8x8xf32> -> vector<2x8x8xf32>
      "tpu.trace_stop"() : () -> ()
      %cst_75 = arith.constant 2.500000e-01 : f32
      %171 = vector.broadcast %cst_75 : f32 to vector<2x8x8xf32>
      %172 = arith.mulf %170, %171 : vector<2x8x8xf32>
      %173 = vector.broadcast %167 : vector<1x1x8xf32> to vector<2x8x8xf32>
      %174 = arith.addf %172, %173 : vector<2x8x8xf32>
      %cst_76 = arith.constant dense<0xFF800000> : vector<2x8xf32>
      %175 = vector.multi_reduction <maximumf>, %174, %cst_76 [2] : vector<2x8x8xf32> to vector<2x8xf32>
      %176 = vector.shape_cast %175 : vector<2x8xf32> to vector<2x8x1xf32>
      %177 = vector.broadcast %176 : vector<2x8x1xf32> to vector<2x8x8xf32>
      %178 = arith.subf %174, %177 : vector<2x8x8xf32>
      %179 = math.exp %178 : vector<2x8x8xf32>
      %cst_77 = arith.constant dense<0.000000e+00> : vector<2x8xf32>
      %180 = vector.multi_reduction <add>, %179, %cst_77 [2] : vector<2x8x8xf32> to vector<2x8xf32>
      %181 = vector.shape_cast %180 : vector<2x8xf32> to vector<2x8x1xf32>
      %182 = tpu.reciprocal %181 {approx = true} : vector<2x8x1xf32> -> vector<2x8x1xf32>
      %183 = vector.broadcast %182 : vector<2x8x1xf32> to vector<2x8x8xf32>
      %184 = arith.mulf %179, %183 : vector<2x8x8xf32>
      %185 = arith.truncf %184 : vector<2x8x8xf32> to vector<2x8x8xbf16>
      "tpu.trace_start"() <{level = 10 : i32, message = "nqk,nkd->nqd"}> : () -> ()
      %cst_78 = arith.constant dense<0.000000e+00> : vector<2x8x16xf32>
      %186 = tpu.matmul %185, %164, %cst_78 {dimension_numbers = #tpu.dot_dimension_numbers<[2], [1], [1], [2], [0, 0, 0, 1, 1, 2], [0], [0]>} : vector<2x8x8xbf16>, vector<2x8x16xbf16>, vector<2x8x16xf32> -> vector<2x8x16xf32>
      "tpu.trace_stop"() : () -> ()
      %187 = tpu.transpose %186, [1, 0, 2] : vector<2x8x16xf32> -> vector<8x2x16xf32>
      %188 = vector.shape_cast %187 : vector<8x2x16xf32> to vector<8x32xf32>
      %189 = arith.truncf %188 : vector<8x32xf32> to vector<8x32xbf16>
      %c0_79 = arith.constant 0 : index
      %c0_80 = arith.constant 0 : index
      %190 = vector.load %arg12[%c0_79, %c0_80] : memref<32x32xbf16, #tpu.memory_space<vmem>>, vector<32x32xbf16>
      %cst_81 = arith.constant dense<0.000000e+00> : vector<8x32xf32>
      %191 = tpu.matmul %189, %190, %cst_81 {dimension_numbers = #tpu.dot_dimension_numbers<[1], [0], [0], [1], [0, 0, 1, 1], [], []>} : vector<8x32xbf16>, vector<32x32xbf16>, vector<8x32xf32> -> vector<8x32xf32>
      %c0_82 = arith.constant 0 : index
      %c0_83 = arith.constant 0 : index
      %192 = vector.load %arg13[%c0_82, %c0_83] : memref<1x32xf32, #tpu.memory_space<vmem>>, vector<1x32xf32>
      %193 = vector.broadcast %192 : vector<1x32xf32> to vector<8x32xf32>
      %194 = arith.addf %191, %193 : vector<8x32xf32>
      %195 = arith.addf %194, %169 : vector<8x32xf32>
      %c0_84 = arith.constant 0 : index
      %c0_85 = arith.constant 0 : index
      %196 = vector.load %arg14[%c0_84, %c0_85] : memref<1x32xf32, #tpu.memory_space<vmem>>, vector<1x32xf32>
      %c0_86 = arith.constant 0 : index
      %c0_87 = arith.constant 0 : index
      %197 = vector.load %arg15[%c0_86, %c0_87] : memref<1x32xf32, #tpu.memory_space<vmem>>, vector<1x32xf32>
      %cst_88 = arith.constant dense<0.000000e+00> : vector<8xf32>
      %198 = vector.multi_reduction <add>, %195, %cst_88 [1] : vector<8x32xf32> to vector<8xf32>
      %199 = vector.shape_cast %198 : vector<8xf32> to vector<8x1xf32>
      %cst_89 = arith.constant 3.200000e+01 : f32
      %200 = vector.broadcast %cst_89 : f32 to vector<8x1xf32>
      %201 = arith.divf %199, %200 : vector<8x1xf32>
      %202 = vector.broadcast %201 : vector<8x1xf32> to vector<8x32xf32>
      %203 = arith.subf %195, %202 : vector<8x32xf32>
      %204 = arith.mulf %203, %203 : vector<8x32xf32>
      %cst_90 = arith.constant dense<0.000000e+00> : vector<8xf32>
      %205 = vector.multi_reduction <add>, %204, %cst_90 [1] : vector<8x32xf32> to vector<8xf32>
      %206 = vector.shape_cast %205 : vector<8xf32> to vector<8x1xf32>
      %cst_91 = arith.constant 3.200000e+01 : f32
      %207 = vector.broadcast %cst_91 : f32 to vector<8x1xf32>
      %208 = arith.divf %206, %207 : vector<8x1xf32>
      %209 = vector.broadcast %201 : vector<8x1xf32> to vector<8x32xf32>
      %210 = arith.subf %195, %209 : vector<8x32xf32>
      %cst_92 = arith.constant 9.99999996E-13 : f32
      %211 = vector.broadcast %cst_92 : f32 to vector<8x1xf32>
      %212 = arith.addf %208, %211 : vector<8x1xf32>
      %213 = math.rsqrt %212 : vector<8x1xf32>
      %214 = vector.broadcast %213 : vector<8x1xf32> to vector<8x32xf32>
      %215 = arith.mulf %210, %214 : vector<8x32xf32>
      %216 = vector.broadcast %196 : vector<1x32xf32> to vector<8x32xf32>
      %217 = arith.mulf %215, %216 : vector<8x32xf32>
      %218 = vector.broadcast %197 : vector<1x32xf32> to vector<8x32xf32>
      %219 = arith.addf %217, %218 : vector<8x32xf32>
      %c1 = arith.constant 1 : index
      %c0_93 = arith.constant 0 : index
      %c0_94 = arith.constant 0 : index
      %220 = vector.load %arg23[%c1, %c0_93, %c0_94] : memref<2x8x32xf32, #tpu.memory_space<vmem>>, vector<1x8x32xf32>
      %221 = vector.shape_cast %220 : vector<1x8x32xf32> to vector<8x32xf32>
      %222 = vector.shape_cast %219 : vector<8x32xf32> to vector<1x8x32xf32>
      tpu.vector_store %arg23[%c1, %c0_93, %c0_94], %222 {strides = array<i32>} : memref<2x8x32xf32, #tpu.memory_space<vmem>>, vector<1x8x32xf32>,
      %223 = arith.truncf %219 : vector<8x32xf32> to vector<8x32xbf16>
      %c1_95 = arith.constant 1 : index
      %c0_96 = arith.constant 0 : index
      %c0_97 = arith.constant 0 : index
      %224 = vector.load %arg24[%c1_95, %c0_96, %c0_97] : memref<2x8x32xbf16, #tpu.memory_space<vmem>>, vector<1x8x32xbf16>
      %225 = vector.shape_cast %224 : vector<1x8x32xbf16> to vector<8x32xbf16>
      %226 = vector.shape_cast %223 : vector<8x32xbf16> to vector<1x8x32xbf16>
      tpu.vector_store %arg24[%c1_95, %c0_96, %c0_97], %226 {strides = array<i32>} : memref<2x8x32xbf16, #tpu.memory_space<vmem>>, vector<1x8x32xbf16>,
    } else {
    }
    %c0 = arith.constant 0 : index
    %c0_1 = arith.constant 0 : index
    %c0_2 = arith.constant 0 : index
    %3 = vector.load %arg24[%c0, %c0_1, %c0_2] : memref<2x8x32xbf16, #tpu.memory_space<vmem>>, vector<2x8x32xbf16>
    %4 = vector.shape_cast %3 : vector<2x8x32xbf16> to vector<16x32xbf16>
    %c0_3 = arith.constant 0 : index
    %c0_4 = arith.constant 0 : index
    %5 = vector.load %arg16[%c0_3, %c0_4] : memref<32x64xbf16, #tpu.memory_space<vmem>>, vector<32x64xbf16>
    %cst = arith.constant dense<0.000000e+00> : vector<16x64xf32>
    %6 = tpu.matmul %4, %5, %cst {dimension_numbers = #tpu.dot_dimension_numbers<[1], [0], [0], [1], [0, 0, 1, 1], [], []>} : vector<16x32xbf16>, vector<32x64xbf16>, vector<16x64xf32> -> vector<16x64xf32>
    %c0_5 = arith.constant 0 : index
    %c0_6 = arith.constant 0 : index
    %7 = vector.load %arg17[%c0_5, %c0_6] : memref<1x64xf32, #tpu.memory_space<vmem>>, vector<1x64xf32>
    %8 = vector.broadcast %7 : vector<1x64xf32> to vector<16x64xf32>
    %9 = arith.addf %6, %8 : vector<16x64xf32>
    %cst_7 = arith.constant 5.000000e-01 : f32
    %10 = vector.broadcast %cst_7 : f32 to vector<16x64xf32>
    %11 = arith.mulf %10, %9 : vector<16x64xf32>
    %cst_8 = arith.constant 0.707106769 : f32
    %12 = vector.broadcast %cst_8 : f32 to vector<16x64xf32>
    %13 = arith.mulf %9, %12 : vector<16x64xf32>
    %14 = math.erf %13 : vector<16x64xf32>
    %cst_9 = arith.constant 1.000000e+00 : f32
    %15 = vector.broadcast %cst_9 : f32 to vector<16x64xf32>
    %16 = arith.addf %15, %14 : vector<16x64xf32>
    %17 = arith.mulf %11, %16 : vector<16x64xf32>
    %18 = arith.truncf %17 : vector<16x64xf32> to vector<16x64xbf16>
    %c0_10 = arith.constant 0 : index
    %c0_11 = arith.constant 0 : index
    %19 = vector.load %arg18[%c0_10, %c0_11] : memref<64x32xbf16, #tpu.memory_space<vmem>>, vector<64x32xbf16>
    %cst_12 = arith.constant dense<0.000000e+00> : vector<16x32xf32>
    %20 = tpu.matmul %18, %19, %cst_12 {dimension_numbers = #tpu.dot_dimension_numbers<[1], [0], [0], [1], [0, 0, 1, 1], [], []>} : vector<16x64xbf16>, vector<64x32xbf16>, vector<16x32xf32> -> vector<16x32xf32>
    %21 = vector.shape_cast %20 : vector<16x32xf32> to vector<2x8x32xf32>
    %c0_i32_13 = arith.constant 0 : i32
    %22 = arith.cmpi eq, %arg1, %c0_i32_13 : i32
    %23 = arith.extui %22 : i1 to i32
    %c0_i32_14 = arith.constant 0 : i32
    %24 = arith.cmpi ne, %23, %c0_i32_14 : i32
    scf.if %24 {
      %c0_19 = arith.constant 0 : index
      %c0_20 = arith.constant 0 : index
      %c0_21 = arith.constant 0 : index
      %31 = vector.load %arg25[%c0_19, %c0_20, %c0_21] : memref<2x8x32xf32, #tpu.memory_space<vmem>>, vector<2x8x32xf32>
      tpu.vector_store %arg25[%c0_19, %c0_20, %c0_21], %21 {strides = array<i32>} : memref<2x8x32xf32, #tpu.memory_space<vmem>>, vector<2x8x32xf32>,
    } else {
    }
    %c0_i32_15 = arith.constant 0 : i32
    %25 = arith.cmpi sgt, %arg1, %c0_i32_15 : i32
    %26 = arith.extui %25 : i1 to i32
    %c0_i32_16 = arith.constant 0 : i32
    %27 = arith.cmpi ne, %26, %c0_i32_16 : i32
    scf.if %27 {
      %c0_19 = arith.constant 0 : index
      %c0_20 = arith.constant 0 : index
      %c0_21 = arith.constant 0 : index
      %31 = vector.load %arg25[%c0_19, %c0_20, %c0_21] : memref<2x8x32xf32, #tpu.memory_space<vmem>>, vector<2x8x32xf32>
      %32 = arith.addf %31, %21 : vector<2x8x32xf32>
      %c0_22 = arith.constant 0 : index
      %c0_23 = arith.constant 0 : index
      %c0_24 = arith.constant 0 : index
      %33 = vector.load %arg25[%c0_22, %c0_23, %c0_24] : memref<2x8x32xf32, #tpu.memory_space<vmem>>, vector<2x8x32xf32>
      tpu.vector_store %arg25[%c0_22, %c0_23, %c0_24], %32 {strides = array<i32>} : memref<2x8x32xf32, #tpu.memory_space<vmem>>, vector<2x8x32xf32>,
    } else {
    }
    %c0_i32_17 = arith.constant 0 : i32
    %28 = arith.cmpi eq, %arg1, %c0_i32_17 : i32
    %29 = arith.extui %28 : i1 to i32
    %c0_i32_18 = arith.constant 0 : i32
    %30 = arith.cmpi ne, %29, %c0_i32_18 : i32
    scf.if %30 {
      %c0_19 = arith.constant 0 : index
      %c0_20 = arith.constant 0 : index
      %c0_21 = arith.constant 0 : index
      %31 = vector.load %arg25[%c0_19, %c0_20, %c0_21] : memref<2x8x32xf32, #tpu.memory_space<vmem>>, vector<2x8x32xf32>
      %c0_22 = arith.constant 0 : index
      %c0_23 = arith.constant 0 : index
      %32 = vector.load %arg19[%c0_22, %c0_23] : memref<1x32xf32, #tpu.memory_space<vmem>>, vector<1x32xf32>
      %33 = vector.shape_cast %32 : vector<1x32xf32> to vector<1x1x32xf32>
      %34 = vector.broadcast %33 : vector<1x1x32xf32> to vector<2x8x32xf32>
      %35 = arith.addf %31, %34 : vector<2x8x32xf32>
      %c0_24 = arith.constant 0 : index
      %c0_25 = arith.constant 0 : index
      %c0_26 = arith.constant 0 : index
      %36 = vector.load %arg23[%c0_24, %c0_25, %c0_26] : memref<2x8x32xf32, #tpu.memory_space<vmem>>, vector<2x8x32xf32>
      %37 = arith.addf %35, %36 : vector<2x8x32xf32>
      %c0_27 = arith.constant 0 : index
      %c0_28 = arith.constant 0 : index
      %38 = vector.load %arg20[%c0_27, %c0_28] : memref<1x32xf32, #tpu.memory_space<vmem>>, vector<1x32xf32>
      %c0_29 = arith.constant 0 : index
      %c0_30 = arith.constant 0 : index
      %39 = vector.load %arg21[%c0_29, %c0_30] : memref<1x32xf32, #tpu.memory_space<vmem>>, vector<1x32xf32>
      %cst_31 = arith.constant dense<0.000000e+00> : vector<2x8xf32>
      %40 = vector.multi_reduction <add>, %37, %cst_31 [2] : vector<2x8x32xf32> to vector<2x8xf32>
      %41 = vector.shape_cast %40 : vector<2x8xf32> to vector<2x8x1xf32>
      %cst_32 = arith.constant 3.200000e+01 : f32
      %42 = vector.broadcast %cst_32 : f32 to vector<2x8x1xf32>
      %43 = arith.divf %41, %42 : vector<2x8x1xf32>
      %44 = vector.broadcast %43 : vector<2x8x1xf32> to vector<2x8x32xf32>
      %45 = arith.subf %37, %44 : vector<2x8x32xf32>
      %46 = arith.mulf %45, %45 : vector<2x8x32xf32>
      %cst_33 = arith.constant dense<0.000000e+00> : vector<2x8xf32>
      %47 = vector.multi_reduction <add>, %46, %cst_33 [2] : vector<2x8x32xf32> to vector<2x8xf32>
      %48 = vector.shape_cast %47 : vector<2x8xf32> to vector<2x8x1xf32>
      %cst_34 = arith.constant 3.200000e+01 : f32
      %49 = vector.broadcast %cst_34 : f32 to vector<2x8x1xf32>
      %50 = arith.divf %48, %49 : vector<2x8x1xf32>
      %51 = vector.broadcast %43 : vector<2x8x1xf32> to vector<2x8x32xf32>
      %52 = arith.subf %37, %51 : vector<2x8x32xf32>
      %cst_35 = arith.constant 9.99999996E-13 : f32
      %53 = vector.broadcast %cst_35 : f32 to vector<2x8x1xf32>
      %54 = arith.addf %50, %53 : vector<2x8x1xf32>
      %55 = math.rsqrt %54 : vector<2x8x1xf32>
      %56 = vector.broadcast %55 : vector<2x8x1xf32> to vector<2x8x32xf32>
      %57 = arith.mulf %52, %56 : vector<2x8x32xf32>
      %58 = vector.shape_cast %38 : vector<1x32xf32> to vector<1x1x32xf32>
      %59 = vector.broadcast %58 : vector<1x1x32xf32> to vector<2x8x32xf32>
      %60 = arith.mulf %57, %59 : vector<2x8x32xf32>
      %61 = vector.shape_cast %39 : vector<1x32xf32> to vector<1x1x32xf32>
      %62 = vector.broadcast %61 : vector<1x1x32xf32> to vector<2x8x32xf32>
      %63 = arith.addf %60, %62 : vector<2x8x32xf32>
      %64 = arith.truncf %63 : vector<2x8x32xf32> to vector<2x8x32xbf16>
      %c0_36 = arith.constant 0 : index
      %c0_37 = arith.constant 0 : index
      %c0_38 = arith.constant 0 : index
      %65 = vector.load %arg22[%c0_36, %c0_37, %c0_38] : memref<2x8x32xbf16, #tpu.memory_space<vmem>>, vector<2x8x32xbf16>
      tpu.vector_store %arg22[%c0_36, %c0_37, %c0_38], %64 {strides = array<i32>} : memref<2x8x32xbf16, #tpu.memory_space<vmem>>, vector<2x8x32xbf16>,
    } else {
    }
    return
  }
  func.func @transform_0(%arg0: i32, %arg1: i32) -> (i32, i32, i32) {
    %c0_i32 = arith.constant 0 : i32
    %c0_i32_0 = arith.constant 0 : i32
    %c0_i32_1 = arith.constant 0 : i32
    return %arg0, %c0_i32, %c0_i32_0 : i32, i32, i32
  }
  func.func @transform_1(%arg0: i32, %arg1: i32) -> (i32, i32, i32) {
    %c0_i32 = arith.constant 0 : i32
    %c0_i32_0 = arith.constant 0 : i32
    %c0_i32_1 = arith.constant 0 : i32
    return %arg0, %c0_i32, %c0_i32_0 : i32, i32, i32
  }
  func.func @transform_2(%arg0: i32, %arg1: i32) -> (i32, i32) {
    %c0_i32 = arith.constant 0 : i32
    %c0_i32_0 = arith.constant 0 : i32
    %c0_i32_1 = arith.constant 0 : i32
    return %c0_i32, %c0_i32_0 : i32, i32
  }
  func.func @transform_3(%arg0: i32, %arg1: i32) -> (i32, i32) {
    %c0_i32 = arith.constant 0 : i32
    %c0_i32_0 = arith.constant 0 : i32
    %c0_i32_1 = arith.constant 0 : i32
    return %c0_i32, %c0_i32_0 : i32, i32
  }
  func.func @transform_4(%arg0: i32, %arg1: i32) -> (i32, i32) {
    %c0_i32 = arith.constant 0 : i32
    %c0_i32_0 = arith.constant 0 : i32
    %c0_i32_1 = arith.constant 0 : i32
    return %c0_i32, %c0_i32_0 : i32, i32
  }
  func.func @transform_5(%arg0: i32, %arg1: i32) -> (i32, i32) {
    %c0_i32 = arith.constant 0 : i32
    %c0_i32_0 = arith.constant 0 : i32
    %c0_i32_1 = arith.constant 0 : i32
    return %c0_i32, %c0_i32_0 : i32, i32
  }
  func.func @transform_6(%arg0: i32, %arg1: i32) -> (i32, i32) {
    %c0_i32 = arith.constant 0 : i32
    %c0_i32_0 = arith.constant 0 : i32
    %c0_i32_1 = arith.constant 0 : i32
    return %c0_i32, %c0_i32_0 : i32, i32
  }
  func.func @transform_7(%arg0: i32, %arg1: i32) -> (i32, i32) {
    %c0_i32 = arith.constant 0 : i32
    %c0_i32_0 = arith.constant 0 : i32
    %c0_i32_1 = arith.constant 0 : i32
    return %c0_i32, %c0_i32_0 : i32, i32
  }
  func.func @transform_8(%arg0: i32, %arg1: i32) -> (i32, i32) {
    %c0_i32 = arith.constant 0 : i32
    %c0_i32_0 = arith.constant 0 : i32
    %c0_i32_1 = arith.constant 0 : i32
    return %c0_i32, %c0_i32_0 : i32, i32
  }
  func.func @transform_9(%arg0: i32, %arg1: i32) -> (i32, i32) {
    %c0_i32 = arith.constant 0 : i32
    %c0_i32_0 = arith.constant 0 : i32
    %c0_i32_1 = arith.constant 0 : i32
    return %c0_i32, %c0_i32_0 : i32, i32
  }
  func.func @transform_10(%arg0: i32, %arg1: i32) -> (i32, i32) {
    %c0_i32 = arith.constant 0 : i32
    %c0_i32_0 = arith.constant 0 : i32
    %c0_i32_1 = arith.constant 0 : i32
    return %c0_i32, %c0_i32_0 : i32, i32
  }
  func.func @transform_11(%arg0: i32, %arg1: i32) -> (i32, i32) {
    %c0_i32 = arith.constant 0 : i32
    %c0_i32_0 = arith.constant 0 : i32
    %c0_i32_1 = arith.constant 0 : i32
    return %c0_i32, %c0_i32_0 : i32, i32
  }
  func.func @transform_12(%arg0: i32, %arg1: i32) -> (i32, i32) {
    %c0_i32 = arith.constant 0 : i32
    %c0_i32_0 = arith.constant 0 : i32
    %c0_i32_1 = arith.constant 0 : i32
    return %c0_i32, %c0_i32_0 : i32, i32
  }
  func.func @transform_13(%arg0: i32, %arg1: i32) -> (i32, i32) {
    %c0_i32 = arith.constant 0 : i32
    %c0_i32_0 = arith.constant 0 : i32
    %c0_i32_1 = arith.constant 0 : i32
    return %c0_i32, %c0_i32_0 : i32, i32
  }
  func.func @transform_14(%arg0: i32, %arg1: i32) -> (i32, i32) {
    %c0_i32 = arith.constant 0 : i32
    %c0_i32_0 = arith.constant 0 : i32
    return %c0_i32, %arg1 : i32, i32
  }
  func.func @transform_15(%arg0: i32, %arg1: i32) -> (i32, i32) {
    %c0_i32 = arith.constant 0 : i32
    %c0_i32_0 = arith.constant 0 : i32
    return %c0_i32, %arg1 : i32, i32
  }
  func.func @transform_16(%arg0: i32, %arg1: i32) -> (i32, i32) {
    %c0_i32 = arith.constant 0 : i32
    %c0_i32_0 = arith.constant 0 : i32
    return %arg1, %c0_i32 : i32, i32
  }
  func.func @transform_17(%arg0: i32, %arg1: i32) -> (i32, i32) {
    %c0_i32 = arith.constant 0 : i32
    %c0_i32_0 = arith.constant 0 : i32
    %c0_i32_1 = arith.constant 0 : i32
    return %c0_i32, %c0_i32_0 : i32, i32
  }
  func.func @transform_18(%arg0: i32, %arg1: i32) -> (i32, i32) {
    %c0_i32 = arith.constant 0 : i32
    %c0_i32_0 = arith.constant 0 : i32
    %c0_i32_1 = arith.constant 0 : i32
    return %c0_i32, %c0_i32_0 : i32, i32
  }
  func.func @transform_19(%arg0: i32, %arg1: i32) -> (i32, i32) {
    %c0_i32 = arith.constant 0 : i32
    %c0_i32_0 = arith.constant 0 : i32
    %c0_i32_1 = arith.constant 0 : i32
    return %c0_i32, %c0_i32_0 : i32, i32
  }
  func.func @transform_20(%arg0: i32, %arg1: i32) -> (i32, i32, i32) {
    %c0_i32 = arith.constant 0 : i32
    %c0_i32_0 = arith.constant 0 : i32
    %c0_i32_1 = arith.constant 0 : i32
    return %arg0, %c0_i32, %c0_i32_0 : i32, i32, i32
  }
}

</mosaic_0001>

<llo_original>
// kernel: tpu_custom_call.1
$region0: #{tpu_custom_call.1}
  #allocation0 [shape = 'u32[]', space=smem, size = 0x4, offset = 0x4, fixed_abs, tag = 'smem constant byte address 0x4 - core index']
  #allocation1 [shape = 'u32[144,128]{1,0:T(1,128)}', space=vmem, size = 0x12000, scoped, tag = 'internal scratch']
  #allocation2 [shape = 'f32[2,8,32]{2,1,0:T(8,128)}', space=vmem, size = 0x2000, scoped, tag = 'scratch operand']
  #allocation3 [shape = 'bf16[2,8,32]{2,1,0:T(8,128)(2,1)}', space=vmem, size = 0x1000, scoped, tag = 'scratch operand']
  #allocation4 [shape = 'f32[2,8,32]{2,1,0:T(8,128)}', space=vmem, size = 0x2000, scoped, tag = 'scratch operand']
  %s0 = inlined_call_operand.vmem [shape: f32[2,8,32], index: 0, kind: input, shape index: {}]
  %s1 = inlined_call_operand.hbm [shape: f32[2,1,8], index: 1, kind: input, shape index: {}]
  %s2 = inlined_call_operand.hbm [shape: f32[1,32], index: 2, kind: input, shape index: {}]
  %s3 = inlined_call_operand.hbm [shape: f32[1,32], index: 3, kind: input, shape index: {}]
  %s4 = inlined_call_operand.vmem [shape: bf16[32,32], index: 4, kind: input, shape index: {}]
  %s5 = inlined_call_operand.hbm [shape: f32[1,32], index: 5, kind: input, shape index: {}]
  %s6 = inlined_call_operand.vmem [shape: bf16[32,32], index: 6, kind: input, shape index: {}]
  %s7 = inlined_call_operand.hbm [shape: f32[1,32], index: 7, kind: input, shape index: {}]
  %s8 = inlined_call_operand.hbm [shape: bf16[32,32], index: 8, kind: input, shape index: {}]
  %s9 = inlined_call_operand.hbm [shape: f32[1,32], index: 9, kind: input, shape index: {}]
  %s10 = inlined_call_operand.vmem [shape: bf16[32,32], index: 10, kind: input, shape index: {}]
  %s11 = inlined_call_operand.vmem [shape: f32[1,32], index: 11, kind: input, shape index: {}]
  %s12 = inlined_call_operand.vmem [shape: f32[1,32], index: 12, kind: input, shape index: {}]
  %s13 = inlined_call_operand.vmem [shape: f32[1,32], index: 13, kind: input, shape index: {}]
  %s14 = inlined_call_operand.hbm [shape: bf16[32,64], index: 14, kind: input, shape index: {}]
  %s15 = inlined_call_operand.vmem [shape: f32[1,64], index: 15, kind: input, shape index: {}]
  %s16 = inlined_call_operand.vmem [shape: bf16[64,32], index: 16, kind: input, shape index: {}]
  %s17 = inlined_call_operand.vmem [shape: f32[1,32], index: 17, kind: input, shape index: {}]
  %s18 = inlined_call_operand.vmem [shape: f32[1,32], index: 18, kind: input, shape index: {}]
  %s19 = inlined_call_operand.vmem [shape: f32[1,32], index: 19, kind: input, shape index: {}]
  %s20 = inlined_call_operand.hbm [shape: bf16[2,8,32], index: 20, kind: output, shape index: {}]
  %s21 = sld [smem:[#allocation0]]
  $region138: #{tpu_custom_call.1} parent=0
    _
  %s23 = ssub.s32 1, %s21
  %s24 = scalar_select 0, %s23, %s21
  $region1: #{tpu_custom_call.1} parent=0
    #allocation5 [shape = 'u8[1024]{0}', space=vmem, size = 0x400, scoped, tag = 'input window, operand 1, single buffered']
    #allocation6 [shape = 's32[1]{0}', space=sflag, size = 0x4, scoped, tag = 'scoped memory for tpu_custom_call.1']
    #allocation7 [shape = 's32[1]{0}', space=sflag, size = 0x4, scoped, tag = 'scoped memory for tpu_custom_call.1']
    #allocation8 [shape = 'u8[512]{0}', space=vmem, size = 0x400, scoped, tag = 'input window, operand 2, single buffered']
    #allocation9 [shape = 's32[1]{0}', space=sflag, size = 0x4, scoped, tag = 'scoped memory for tpu_custom_call.1']
    #allocation10 [shape = 'u8[512]{0}', space=vmem, size = 0x400, scoped, tag = 'input window, operand 3, single buffered']
    #allocation11 [shape = 'u8[512]{0}', space=vmem, size = 0x400, scoped, tag = 'input window, operand 5, single buffered']
    #allocation12 [shape = 's32[1]{0}', space=sflag, size = 0x4, scoped, tag = 'scoped memory for tpu_custom_call.1']
    #allocation13 [shape = 'u8[512]{0}', space=vmem, size = 0x400, scoped, tag = 'input window, operand 7, single buffered']
    #allocation14 [shape = 'u8[8192]{0}', space=vmem, size = 0x2000, scoped, tag = 'input window, operand 8, single buffered']
    #allocation15 [shape = 's32[1]{0}', space=sflag, size = 0x4, scoped, tag = 'scoped memory for tpu_custom_call.1']
    #allocation16 [shape = 'u8[512]{0}', space=vmem, size = 0x400, scoped, tag = 'input window, operand 9, single buffered']
    #allocation17 [shape = 'u8[8192]{0}', space=vmem, size = 0x2000, scoped, tag = 'input window, operand 14, single buffered']
    #allocation18 [shape = 's32[1]{0}', space=sflag, size = 0x4, scoped, tag = 'scoped memory for tpu_custom_call.1']
    #allocation19 [shape = 'u8[4096]{0}', space=vmem, size = 0x1000, scoped, tag = 'output window, operand 0, single buffered']
    %25 = vsyncpa [#allocation6], 0
    %26 = vsyncpa [#allocation9], 0
    %27 = vsyncpa [#allocation12], 0
    %28 = vsyncpa [#allocation15], 0
    %29 = vsyncpa [#allocation18], 0
    %30 = vsyncpa [#allocation7], 0
    // Predicated region
    $region2: #{tpu_custom_call.1} parent=1 // pred_check
      _
    $region3: #{tpu_custom_call.1} parent=1 // pred_check_branch
      %32 = sbr.rel (0) target = $region5
    $region4: #{tpu_custom_call.1} parent=1 // pred_region
      _
    $region5: #{tpu_custom_call.1} parent=1 // pred_fallthru
      _
    // Predicated region
    $region6: #{tpu_custom_call.1} parent=1 // pred_check
      _
    $region7: #{tpu_custom_call.1} parent=1 // pred_check_branch
      %34 = sbr.rel (0) target = $region9
    $region8: #{tpu_custom_call.1} parent=1 // pred_region
      %s36 = ssub.s32 32, 32
      %37 = vsyncadd [#allocation6], %s36
      %s38 = sshll.u32 [#allocation5], 4
      %s39 = int_to_ptr.vmem [resolvable:$true] %s38
      %44 = dma.hbm_to_vmem [thread:$0]  %s1, 32, %s39, [#allocation6], 16, 16, 1
    $region9: #{tpu_custom_call.1} parent=1 // pred_fallthru
      _
    // Predicated region
    $region10: #{tpu_custom_call.1} parent=1 // pred_check
      _
    $region11: #{tpu_custom_call.1} parent=1 // pred_check_branch
      %46 = sbr.rel (0) target = $region13
    $region12: #{tpu_custom_call.1} parent=1 // pred_region
      %s48 = ssub.s32 16, 16
      %49 = vsyncadd [#allocation9], %s48
      %s51 = sshll.u32 [#allocation8], 4
      %s52 = int_to_ptr.vmem [resolvable:$true] %s51
      %54 = dma.hbm_to_vmem [thread:$0]  %s2, 16, %s52, [#allocation9]
    $region13: #{tpu_custom_call.1} parent=1 // pred_fallthru
      _
    // Predicated region
    $region14: #{tpu_custom_call.1} parent=1 // pred_check
      _
    $region15: #{tpu_custom_call.1} parent=1 // pred_check_branch
      %56 = sbr.rel (0) target = $region17
    $region16: #{tpu_custom_call.1} parent=1 // pred_region
      %s58 = ssub.s32 16, 16
      %59 = vsyncadd [#allocation9], %s58
      %s61 = sshll.u32 [#allocation10], 4
      %s62 = int_to_ptr.vmem [resolvable:$true] %s61
      %64 = dma.hbm_to_vmem [thread:$0]  %s3, 16, %s62, [#allocation9]
    $region17: #{tpu_custom_call.1} parent=1 // pred_fallthru
      _
    // Predicated region
    $region18: #{tpu_custom_call.1} parent=1 // pred_check
      _
    $region19: #{tpu_custom_call.1} parent=1 // pred_check_branch
      %66 = sbr.rel (0) target = $region21
    $region20: #{tpu_custom_call.1} parent=1 // pred_region
      _
    $region21: #{tpu_custom_call.1} parent=1 // pred_fallthru
      _
    // Predicated region
    $region22: #{tpu_custom_call.1} parent=1 // pred_check
      _
    $region23: #{tpu_custom_call.1} parent=1 // pred_check_branch
      %68 = sbr.rel (0) target = $region25
    $region24: #{tpu_custom_call.1} parent=1 // pred_region
      %s70 = ssub.s32 16, 16
      %71 = vsyncadd [#allocation12], %s70
      %s73 = sshll.u32 [#allocation11], 4
      %s74 = int_to_ptr.vmem [resolvable:$true] %s73
      %76 = dma.hbm_to_vmem [thread:$0]  %s5, 16, %s74, [#allocation12]
    $region25: #{tpu_custom_call.1} parent=1 // pred_fallthru
      _
    // Predicated region
    $region26: #{tpu_custom_call.1} parent=1 // pred_check
      _
    $region27: #{tpu_custom_call.1} parent=1 // pred_check_branch
      %78 = sbr.rel (0) target = $region29
    $region28: #{tpu_custom_call.1} parent=1 // pred_region
      _
    $region29: #{tpu_custom_call.1} parent=1 // pred_fallthru
      _
    // Predicated region
    $region30: #{tpu_custom_call.1} parent=1 // pred_check
      _
    $region31: #{tpu_custom_call.1} parent=1 // pred_check_branch
      %80 = sbr.rel (0) target = $region33
    $region32: #{tpu_custom_call.1} parent=1 // pred_region
      %s82 = ssub.s32 16, 16
      %83 = vsyncadd [#allocation12], %s82
      %s85 = sshll.u32 [#allocation13], 4
      %s86 = int_to_ptr.vmem [resolvable:$true] %s85
      %88 = dma.hbm_to_vmem [thread:$0]  %s7, 16, %s86, [#allocation12]
    $region33: #{tpu_custom_call.1} parent=1 // pred_fallthru
      _
    // Predicated region
    $region34: #{tpu_custom_call.1} parent=1 // pred_check
      _
    $region35: #{tpu_custom_call.1} parent=1 // pred_check_branch
      %90 = sbr.rel (0) target = $region37
    $region36: #{tpu_custom_call.1} parent=1 // pred_region
      %s92 = ssub.s32 256, 256
      %93 = vsyncadd [#allocation15], %s92
      %s94 = sshll.u32 [#allocation14], 4
      %s95 = int_to_ptr.vmem [resolvable:$true] %s94
      %100 = dma.hbm_to_vmem [thread:$0]  %s8, 256, %s95, [#allocation15], 64, 64, 4
    $region37: #{tpu_custom_call.1} parent=1 // pred_fallthru
      _
    // Predicated region
    $region38: #{tpu_custom_call.1} parent=1 // pred_check
      _
    $region39: #{tpu_custom_call.1} parent=1 // pred_check_branch
      %102 = sbr.rel (0) target = $region41
    $region40: #{tpu_custom_call.1} parent=1 // pred_region
      %s104 = ssub.s32 16, 16
      %105 = vsyncadd [#allocation15], %s104
      %s107 = sshll.u32 [#allocation16], 4
      %s108 = int_to_ptr.vmem [resolvable:$true] %s107
      %110 = dma.hbm_to_vmem [thread:$0]  %s9, 16, %s108, [#allocation15]
    $region41: #{tpu_custom_call.1} parent=1 // pred_fallthru
      _
    // Predicated region
    $region42: #{tpu_custom_call.1} parent=1 // pred_check
      _
    $region43: #{tpu_custom_call.1} parent=1 // pred_check_branch
      %112 = sbr.rel (0) target = $region45
    $region44: #{tpu_custom_call.1} parent=1 // pred_region
      _
    $region45: #{tpu_custom_call.1} parent=1 // pred_fallthru
      _
    // Predicated region
    $region46: #{tpu_custom_call.1} parent=1 // pred_check
      _
    $region47: #{tpu_custom_call.1} parent=1 // pred_check_branch
      %114 = sbr.rel (0) target = $region49
    $region48: #{tpu_custom_call.1} parent=1 // pred_region
      _
    $region49: #{tpu_custom_call.1} parent=1 // pred_fallthru
      _
    // Predicated region
    $region50: #{tpu_custom_call.1} parent=1 // pred_check
      _
    $region51: #{tpu_custom_call.1} parent=1 // pred_check_branch
      %116 = sbr.rel (0) target = $region53
    $region52: #{tpu_custom_call.1} parent=1 // pred_region
      _
    $region53: #{tpu_custom_call.1} parent=1 // pred_fallthru
      _
    // Predicated region
    $region54: #{tpu_custom_call.1} parent=1 // pred_check
      _
    $region55: #{tpu_custom_call.1} parent=1 // pred_check_branch
      %118 = sbr.rel (0) target = $region57
    $region56: #{tpu_custom_call.1} parent=1 // pred_region
      _
    $region57: #{tpu_custom_call.1} parent=1 // pred_fallthru
      _
    // Predicated region
    $region58: #{tpu_custom_call.1} parent=1 // pred_check
      _
    $region59: #{tpu_custom_call.1} parent=1 // pred_check_branch
      %120 = sbr.rel (0) target = $region61
    $region60: #{tpu_custom_call.1} parent=1 // pred_region
      %s122 = ssub.s32 256, 256
      %123 = vsyncadd [#allocation18], %s122
      %s124 = sshll.u32 [#allocation17], 4
      %s125 = int_to_ptr.vmem [resolvable:$true] %s124
      %130 = dma.hbm_to_vmem [thread:$0]  %s14, 256, %s125, [#allocation18], 64, 64, 4
    $region61: #{tpu_custom_call.1} parent=1 // pred_fallthru
      _
    // Predicated region
    $region62: #{tpu_custom_call.1} parent=1 // pred_check
      _
    $region63: #{tpu_custom_call.1} parent=1 // pred_check_branch
      %132 = sbr.rel (0) target = $region65
    $region64: #{tpu_custom_call.1} parent=1 // pred_region
      _
    $region65: #{tpu_custom_call.1} parent=1 // pred_fallthru
      _
    // Predicated region
    $region66: #{tpu_custom_call.1} parent=1 // pred_check
      _
    $region67: #{tpu_custom_call.1} parent=1 // pred_check_branch
      %134 = sbr.rel (0) target = $region69
    $region68: #{tpu_custom_call.1} parent=1 // pred_region
      _
    $region69: #{tpu_custom_call.1} parent=1 // pred_fallthru
      _
    // Predicated region
    $region70: #{tpu_custom_call.1} parent=1 // pred_check
      _
    $region71: #{tpu_custom_call.1} parent=1 // pred_check_branch
      %136 = sbr.rel (0) target = $region73
    $region72: #{tpu_custom_call.1} parent=1 // pred_region
      _
    $region73: #{tpu_custom_call.1} parent=1 // pred_fallthru
      _
    // Predicated region
    $region74: #{tpu_custom_call.1} parent=1 // pred_check
      _
    $region75: #{tpu_custom_call.1} parent=1 // pred_check_branch
      %138 = sbr.rel (0) target = $region77
    $region76: #{tpu_custom_call.1} parent=1 // pred_region
      _
    $region77: #{tpu_custom_call.1} parent=1 // pred_fallthru
      _
    // Predicated region
    $region78: #{tpu_custom_call.1} parent=1 // pred_check
      _
    $region79: #{tpu_custom_call.1} parent=1 // pred_check_branch
      %140 = sbr.rel (0) target = $region81
    $region80: #{tpu_custom_call.1} parent=1 // pred_region
      _
    $region81: #{tpu_custom_call.1} parent=1 // pred_fallthru
      _
    // Predicated region
    $region82: #{tpu_custom_call.1} parent=1 // pred_check
      _
    $region83: #{tpu_custom_call.1} parent=1 // pred_check_branch
      %142 = sbr.rel (0) target = $region85
    $region84: #{tpu_custom_call.1} parent=1 // pred_region
      %143 = dma.done [#allocation6], 32
    $region85: #{tpu_custom_call.1} parent=1 // pred_fallthru
      _
    // Predicated region
    $region86: #{tpu_custom_call.1} parent=1 // pred_check
      _
    $region87: #{tpu_custom_call.1} parent=1 // pred_check_branch
      %145 = sbr.rel (0) target = $region89
    $region88: #{tpu_custom_call.1} parent=1 // pred_region
      %146 = dma.done [#allocation9], 16
    $region89: #{tpu_custom_call.1} parent=1 // pred_fallthru
      _
    // Predicated region
    $region90: #{tpu_custom_call.1} parent=1 // pred_check
      _
    $region91: #{tpu_custom_call.1} parent=1 // pred_check_branch
      %148 = sbr.rel (0) target = $region93
    $region92: #{tpu_custom_call.1} parent=1 // pred_region
      %149 = dma.done [#allocation9], 16
    $region93: #{tpu_custom_call.1} parent=1 // pred_fallthru
      _
    // Predicated region
    $region94: #{tpu_custom_call.1} parent=1 // pred_check
      _
    $region95: #{tpu_custom_call.1} parent=1 // pred_check_branch
      %151 = sbr.rel (0) target = $region97
    $region96: #{tpu_custom_call.1} parent=1 // pred_region
      %152 = dma.done [#allocation12], 16
    $region97: #{tpu_custom_call.1} parent=1 // pred_fallthru
      _
    // Predicated region
    $region98: #{tpu_custom_call.1} parent=1 // pred_check
      _
    $region99: #{tpu_custom_call.1} parent=1 // pred_check_branch
      %154 = sbr.rel (0) target = $region101
    $region100: #{tpu_custom_call.1} parent=1 // pred_region
      %155 = dma.done [#allocation12], 16
    $region101: #{tpu_custom_call.1} parent=1 // pred_fallthru
      _
    // Predicated region
    $region102: #{tpu_custom_call.1} parent=1 // pred_check
      _
    $region103: #{tpu_custom_call.1} parent=1 // pred_check_branch
      %157 = sbr.rel (0) target = $region105
    $region104: #{tpu_custom_call.1} parent=1 // pred_region
      %158 = dma.done [#allocation15], 256
    $region105: #{tpu_custom_call.1} parent=1 // pred_fallthru
      _
    // Predicated region
    $region106: #{tpu_custom_call.1} parent=1 // pred_check
      _
    $region107: #{tpu_custom_call.1} parent=1 // pred_check_branch
      %160 = sbr.rel (0) target = $region109
    $region108: #{tpu_custom_call.1} parent=1 // pred_region
      %161 = dma.done [#allocation15], 16
    $region109: #{tpu_custom_call.1} parent=1 // pred_fallthru
      _
    // Predicated region
    $region110: #{tpu_custom_call.1} parent=1 // pred_check
      _
    $region111: #{tpu_custom_call.1} parent=1 // pred_check_branch
      %163 = sbr.rel (0) target = $region113
    $region112: #{tpu_custom_call.1} parent=1 // pred_region
      %164 = dma.done [#allocation18], 256
    $region113: #{tpu_custom_call.1} parent=1 // pred_fallthru
      _
    %p166 = scmp.eq.s32.totalorder 0, 0
    // Predicated region
    $region114: #{tpu_custom_call.1} parent=1 // pred_check
      %p167 = pneg %p166
    $region115: #{tpu_custom_call.1} parent=1 // pred_check_branch
      %169 = sbr.rel (%p167) target = $region117
    $region116: #{tpu_custom_call.1} parent=1 // pred_region
      %v170 = vld [vmem:[%s0] sm:$0xff]
      %v171 = vld [vmem:[%s0 + $0x8] sm:$0xff]
      %v172 = vld [vmem:[#allocation8] sm:$0x1]
      %v173 = vld [vmem:[#allocation10] sm:$0x1]
      %vm174 = vcmask 261120
      %v175 = vsel %vm174, %v170, 0.0
      %176 = vadd.xlane.f32.xlu0 %v175
      %v177 = vpop.xlane.xlu0 %176
      %v178 = vsel %vm174, %v171, 0.0
      %179 = vadd.xlane.f32.xlu0 %v178
      %v180 = vpop.xlane.xlu0 %179
      %v181 = vrcp.pop 32.0
      %v182 = vmul.f32 %v177, %v181
      %v183 = vmul.f32 %v180, %v181
      %v184 = vsub.f32 %v170, %v182
      %v185 = vsub.f32 %v171, %v183
      %v186 = vmul.f32 %v184, %v184
      %v187 = vmul.f32 %v185, %v185
      %v188 = vsel %vm174, %v186, 0.0
      %189 = vadd.xlane.f32.xlu0 %v188
      %v190 = vpop.xlane.xlu0 %189
      %v191 = vsel %vm174, %v187, 0.0
      %192 = vadd.xlane.f32.xlu0 %v191
      %v193 = vpop.xlane.xlu0 %192
      %v194 = vmul.f32 %v190, %v181
      %v195 = vmul.f32 %v193, %v181
      %v196 = vadd.f32 %v194, 1e-12
      %v197 = vadd.f32 %v195, 1e-12
      %v198 = vrsqrt.pop %v196
      %v199 = vrsqrt.pop %v197
      %v200 = vmul.f32 %v184, %v198
      %v201 = vmul.f32 %v185, %v199
      %v203 = vlaneseq
      %v204 = vshrl.u32 %v203, 7
      %v205 = vsub.s32 0, %v204
      %v206 = vrot.slane %v172, %v205
      %v208 = vmul.f32 %v200, %v206
      %v209 = vmul.f32 %v201, %v206
      %v211 = vlaneseq
      %v212 = vshrl.u32 %v211, 7
      %v213 = vsub.s32 0, %v212
      %v214 = vrot.slane %v173, %v213
      %v216 = vadd.f32 %v208, %v214
      %v217 = vadd.f32 %v209, %v214
      %v218 = vpack.c.bf16 %v216, %v216
      %v219 = vpack.c.bf16 %v217, %v217
      %v220 = vld [vmem:[#allocation5] sm:$0x1]
      %v221 = vld [vmem:[#allocation5 + $0x1] sm:$0x1]
      %v222 = vld [vmem:[%s4] sm:$0xf]
      %v223 = vld [vmem:[%s4 + $0x4] sm:$0xf]
      %v224 = vld [vmem:[%s4 + $0x8] sm:$0xf]
      %v225 = vld [vmem:[%s4 + $0xc] sm:$0xf]
      %v226 = vld [vmem:[#allocation11] sm:$0x1]
      %v228 = vlaneseq
      %v229 = vshrl.u32 %v228, 7
      %v230 = vsub.s32 0, %v229
      %v231 = vrot.slane %v226, %v230
      %v235 = vunpack.c.l.b16 %v218
      %v236 = vunpack.c.l.b16 %v219
      %v237 = vpack.c.b16 %v236, %v235
      %v242 = vunpack.c.l.b16 %v222
      %v243 = vunpack.c.l.b16 %v223
      %v244 = vunpack.c.l.b16 %v224
      %v245 = vunpack.c.l.b16 %v225
      %v246 = vpack.c.b16 %v243, %v242
      %v247 = vpack.c.b16 %v245, %v244
      %v251 = vsel %vm174, %v237, 0
      %253 = vmatprep.subr.bf16.mxu0 0
      %254 = vmatpush1.bf16.msra.mxu0 0
      %255 = vmatprep.subr.bf16.mxu0 0
      %256 = vmatpush1.bf16.msra.mxu0 0
      %257 = vmatprep.subr.bf16.mxu0 0
      %258 = vmatpush1.bf16.msra.mxu0 0
      %259 = vmatprep.subr.bf16.mxu0 0
      %260 = vmatpush1.bf16.msra.mxu0 0
      %261 = vmatprep.subr.bf16.mxu0 0
      %262 = vmatpush1.bf16.msra.mxu0 0
      %263 = vmatprep.subr.bf16.mxu0 0
      %264 = vmatpush1.bf16.msra.mxu0 0
      %265 = vmatprep.subr.bf16.mxu0 0
      %266 = vmatpush1.bf16.msra.mxu0 %v247
      %267 = vmatprep.subr.bf16.mxu0 0
      %268 = vmatpush1.bf16.msra.mxu0 %v246
      %269 = vmatprep.subr.bf16.mxu0 0
      %270 = vmatpush2.bf16.msra.mxu0 0
      %271 = vmatprep.subr.bf16.mxu0 0
      %272 = vmatpush2.bf16.msra.mxu0 0
      %273 = vmatprep.subr.bf16.mxu0 0
      %274 = vmatpush2.bf16.msra.mxu0 0
      %275 = vmatprep.subr.bf16.mxu0 0
      %276 = vmatpush2.bf16.msra.mxu0 0
      %277 = vmatprep.subr.bf16.mxu0 0
      %278 = vmatpush2.bf16.msra.mxu0 0
      %279 = vmatprep.subr.bf16.mxu0 0
      %280 = vmatpush2.bf16.msra.mxu0 0
      %281 = vmatprep.subr.bf16.mxu0 0
      %282 = vmatpush2.bf16.msra.mxu0 0
      %283 = vmatprep.subr.bf16.mxu0 0
      %284 = vmatpush2.bf16.msra.mxu0 0
      %285 = vmatprep.mubr.bf16.mxu0 0
      %286 = vmatmul.mubr.bf16.gmra.mxu0 %v251
      %v287 = vpop.f32.mrf.mxu0
      %v288 = vadd.f32 %v231, %v287
      %v289 = vpop.f32.mrf.mxu0
      %v290 = vpop.f32.mrf.mxu0
      %v291 = vadd.f32 %v231, %v290
      %v292 = vpop.f32.mrf.mxu0
      %293 = vdwg.mxu0
      %v294 = vld [vmem:[%s6] sm:$0xf]
      %v295 = vld [vmem:[%s6 + $0x4] sm:$0xf]
      %v296 = vld [vmem:[%s6 + $0x8] sm:$0xf]
      %v297 = vld [vmem:[%s6 + $0xc] sm:$0xf]
      %v298 = vld [vmem:[#allocation13] sm:$0x1]
      %v300 = vlaneseq
      %v301 = vshrl.u32 %v300, 7
      %v302 = vsub.s32 0, %v301
      %v303 = vrot.slane %v298, %v302
      %v309 = vunpack.c.l.b16 %v294
      %v310 = vunpack.c.l.b16 %v295
      %v311 = vunpack.c.l.b16 %v296
      %v312 = vunpack.c.l.b16 %v297
      %v313 = vpack.c.b16 %v310, %v309
      %v314 = vpack.c.b16 %v312, %v311
      %317 = vmatprep.subr.bf16.mxu0 0
      %318 = vmatpush1.bf16.msra.mxu0 0
      %319 = vmatprep.subr.bf16.mxu0 0
      %320 = vmatpush1.bf16.msra.mxu0 0
      %321 = vmatprep.subr.bf16.mxu0 0
      %322 = vmatpush1.bf16.msra.mxu0 0
      %323 = vmatprep.subr.bf16.mxu0 0
      %324 = vmatpush1.bf16.msra.mxu0 0
      %325 = vmatprep.subr.bf16.mxu0 0
      %326 = vmatpush1.bf16.msra.mxu0 0
      %327 = vmatprep.subr.bf16.mxu0 0
      %328 = vmatpush1.bf16.msra.mxu0 0
      %329 = vmatprep.subr.bf16.mxu0 0
      %330 = vmatpush1.bf16.msra.mxu0 %v314
      %331 = vmatprep.subr.bf16.mxu0 0
      %332 = vmatpush1.bf16.msra.mxu0 %v313
      %333 = vmatprep.subr.bf16.mxu0 0
      %334 = vmatpush2.bf16.msra.mxu0 0
      %335 = vmatprep.subr.bf16.mxu0 0
      %336 = vmatpush2.bf16.msra.mxu0 0
      %337 = vmatprep.subr.bf16.mxu0 0
      %338 = vmatpush2.bf16.msra.mxu0 0
      %339 = vmatprep.subr.bf16.mxu0 0
      %340 = vmatpush2.bf16.msra.mxu0 0
      %341 = vmatprep.subr.bf16.mxu0 0
      %342 = vmatpush2.bf16.msra.mxu0 0
      %343 = vmatprep.subr.bf16.mxu0 0
      %344 = vmatpush2.bf16.msra.mxu0 0
      %345 = vmatprep.subr.bf16.mxu0 0
      %346 = vmatpush2.bf16.msra.mxu0 0
      %347 = vmatprep.subr.bf16.mxu0 0
      %348 = vmatpush2.bf16.msra.mxu0 0
      %349 = vmatprep.mubr.bf16.mxu0 0
      %350 = vmatmul.mubr.bf16.gmra.mxu0 %v251
      %v351 = vpop.f32.mrf.mxu0
      %v352 = vadd.f32 %v303, %v351
      %v353 = vpop.f32.mrf.mxu0
      %v354 = vpop.f32.mrf.mxu0
      %v355 = vadd.f32 %v303, %v354
      %v356 = vpop.f32.mrf.mxu0
      %357 = vdwg.mxu0
      %v358 = vld [vmem:[#allocation14] sm:$0xf]
      %v359 = vld [vmem:[#allocation14 + $0x4] sm:$0xf]
      %v360 = vld [vmem:[#allocation14 + $0x8] sm:$0xf]
      %v361 = vld [vmem:[#allocation14 + $0xc] sm:$0xf]
      %v362 = vld [vmem:[#allocation16] sm:$0x1]
      %v364 = vlaneseq
      %v365 = vshrl.u32 %v364, 7
      %v366 = vsub.s32 0, %v365
      %v367 = vrot.slane %v362, %v366
      %v373 = vunpack.c.l.b16 %v358
      %v374 = vunpack.c.l.b16 %v359
      %v375 = vunpack.c.l.b16 %v360
      %v376 = vunpack.c.l.b16 %v361
      %v377 = vpack.c.b16 %v374, %v373
      %v378 = vpack.c.b16 %v376, %v375
      %381 = vmatprep.subr.bf16.mxu0 0
      %382 = vmatpush1.bf16.msra.mxu0 0
      %383 = vmatprep.subr.bf16.mxu0 0
      %384 = vmatpush1.bf16.msra.mxu0 0
      %385 = vmatprep.subr.bf16.mxu0 0
      %386 = vmatpush1.bf16.msra.mxu0 0
      %387 = vmatprep.subr.bf16.mxu0 0
      %388 = vmatpush1.bf16.msra.mxu0 0
      %389 = vmatprep.subr.bf16.mxu0 0
      %390 = vmatpush1.bf16.msra.mxu0 0
      %391 = vmatprep.subr.bf16.mxu0 0
      %392 = vmatpush1.bf16.msra.mxu0 0
      %393 = vmatprep.subr.bf16.mxu0 0
      %394 = vmatpush1.bf16.msra.mxu0 %v378
      %395 = vmatprep.subr.bf16.mxu0 0
      %396 = vmatpush1.bf16.msra.mxu0 %v377
      %397 = vmatprep.subr.bf16.mxu0 0
      %398 = vmatpush2.bf16.msra.mxu0 0
      %399 = vmatprep.subr.bf16.mxu0 0
      %400 = vmatpush2.bf16.msra.mxu0 0
      %401 = vmatprep.subr.bf16.mxu0 0
      %402 = vmatpush2.bf16.msra.mxu0 0
      %403 = vmatprep.subr.bf16.mxu0 0
      %404 = vmatpush2.bf16.msra.mxu0 0
      %405 = vmatprep.subr.bf16.mxu0 0
      %406 = vmatpush2.bf16.msra.mxu0 0
      %407 = vmatprep.subr.bf16.mxu0 0
      %408 = vmatpush2.bf16.msra.mxu0 0
      %409 = vmatprep.subr.bf16.mxu0 0
      %410 = vmatpush2.bf16.msra.mxu0 0
      %411 = vmatprep.subr.bf16.mxu0 0
      %412 = vmatpush2.bf16.msra.mxu0 0
      %413 = vmatprep.mubr.bf16.mxu0 0
      %414 = vmatmul.mubr.bf16.gmra.mxu0 %v251
      %v415 = vpop.f32.mrf.mxu0
      %v416 = vadd.f32 %v367, %v415
      %v417 = vpop.f32.mrf.mxu0
      %v418 = vpop.f32.mrf.mxu0
      %v419 = vadd.f32 %v367, %v418
      %v420 = vpop.f32.mrf.mxu0
      %421 = vdwg.mxu0
      %424 = vrot.lane.b32.xlu0 %v288, 112
      %v425 = vpop.permute.xlu0 %424
      %426 = vrot.lane.b32.xlu0 %v291, 112
      %v427 = vpop.permute.xlu0 %426
      %v430 = vcombine.high %v288, 0.0
      %v432 = vunpack.c.l.s4 1983009808
      %v433 = vunpack.c.0.s8 %v432
      %v434 = vlaneseq
      %v435 = vshrl.u32 %v434, 7
      %v436 = vsub.s32 %v433, %v435
      %v437 = vrot.slane %v288, %v436
      %v439 = vunpack.c.l.s4 1983009808
      %v440 = vunpack.c.0.s8 %v439
      %v441 = vlaneseq
      %v442 = vshrl.u32 %v441, 7
      %v443 = vsub.s32 %v440, %v442
      %v444 = vrot.slane %v430, %v443
      %v445 = vcombine.high %v425, 0.0
      %v447 = vunpack.c.l.s4 1983009808
      %v448 = vunpack.c.0.s8 %v447
      %v449 = vlaneseq
      %v450 = vshrl.u32 %v449, 7
      %v451 = vsub.s32 %v448, %v450
      %v452 = vrot.slane %v425, %v451
      %v454 = vunpack.c.l.s4 1983009808
      %v455 = vunpack.c.0.s8 %v454
      %v456 = vlaneseq
      %v457 = vshrl.u32 %v456, 7
      %v458 = vsub.s32 %v455, %v457
      %v459 = vrot.slane %v445, %v458
      %v460 = vcombine.low %v437, %v452
      %v461 = vcombine.high %v437, %v452
      %v463 = vunpack.c.l.s4 1934713408
      %v464 = vunpack.c.0.s8 %v463
      %v465 = vlaneseq
      %v466 = vshrl.u32 %v465, 7
      %v467 = vsub.s32 %v464, %v466
      %v468 = vrot.slane %v460, %v467
      %v470 = vunpack.c.l.s4 1934713408
      %v471 = vunpack.c.0.s8 %v470
      %v472 = vlaneseq
      %v473 = vshrl.u32 %v472, 7
      %v474 = vsub.s32 %v471, %v473
      %v475 = vrot.slane %v461, %v474
      %v476 = vcombine.low %v444, %v459
      %v477 = vcombine.high %v444, %v459
      %v479 = vunpack.c.l.s4 1934713408
      %v480 = vunpack.c.0.s8 %v479
      %v481 = vlaneseq
      %v482 = vshrl.u32 %v481, 7
      %v483 = vsub.s32 %v480, %v482
      %v484 = vrot.slane %v476, %v483
      %v486 = vunpack.c.l.s4 1934713408
      %v487 = vunpack.c.0.s8 %v486
      %v488 = vlaneseq
      %v489 = vshrl.u32 %v488, 7
      %v490 = vsub.s32 %v487, %v489
      %v491 = vrot.slane %v477, %v490
      %v492 = vcombine.high %v468, 0.0
      %v493 = vcombine.high %v475, 0.0
      %v494 = vcombine.high %v484, 0.0
      %v495 = vcombine.high %v491, 0.0
      %v496 = vcombine.high %v291, 0.0
      %v498 = vunpack.c.l.s4 1983009808
      %v499 = vunpack.c.0.s8 %v498
      %v500 = vlaneseq
      %v501 = vshrl.u32 %v500, 7
      %v502 = vsub.s32 %v499, %v501
      %v503 = vrot.slane %v291, %v502
      %v505 = vunpack.c.l.s4 1983009808
      %v506 = vunpack.c.0.s8 %v505
      %v507 = vlaneseq
      %v508 = vshrl.u32 %v507, 7
      %v509 = vsub.s32 %v506, %v508
      %v510 = vrot.slane %v496, %v509
      %v511 = vcombine.high %v427, 0.0
      %v513 = vunpack.c.l.s4 1983009808
      %v514 = vunpack.c.0.s8 %v513
      %v515 = vlaneseq
      %v516 = vshrl.u32 %v515, 7
      %v517 = vsub.s32 %v514, %v516
      %v518 = vrot.slane %v427, %v517
      %v520 = vunpack.c.l.s4 1983009808
      %v521 = vunpack.c.0.s8 %v520
      %v522 = vlaneseq
      %v523 = vshrl.u32 %v522, 7
      %v524 = vsub.s32 %v521, %v523
      %v525 = vrot.slane %v511, %v524
      %v526 = vcombine.low %v503, %v518
      %v527 = vcombine.high %v503, %v518
      %v529 = vunpack.c.l.s4 1934713408
      %v530 = vunpack.c.0.s8 %v529
      %v531 = vlaneseq
      %v532 = vshrl.u32 %v531, 7
      %v533 = vsub.s32 %v530, %v532
      %v534 = vrot.slane %v526, %v533
      %v536 = vunpack.c.l.s4 1934713408
      %v537 = vunpack.c.0.s8 %v536
      %v538 = vlaneseq
      %v539 = vshrl.u32 %v538, 7
      %v540 = vsub.s32 %v537, %v539
      %v541 = vrot.slane %v527, %v540
      %v542 = vcombine.low %v510, %v525
      %v543 = vcombine.high %v510, %v525
      %v545 = vunpack.c.l.s4 1934713408
      %v546 = vunpack.c.0.s8 %v545
      %v547 = vlaneseq
      %v548 = vshrl.u32 %v547, 7
      %v549 = vsub.s32 %v546, %v548
      %v550 = vrot.slane %v542, %v549
      %v552 = vunpack.c.l.s4 1934713408
      %v553 = vunpack.c.0.s8 %v552
      %v554 = vlaneseq
      %v555 = vshrl.u32 %v554, 7
      %v556 = vsub.s32 %v553, %v555
      %v557 = vrot.slane %v543, %v556
      %v558 = vcombine.high %v534, 0.0
      %v559 = vcombine.high %v541, 0.0
      %v560 = vcombine.high %v550, 0.0
      %v561 = vcombine.high %v557, 0.0
      %564 = vrot.lane.b32.xlu0 %v352, 112
      %v565 = vpop.permute.xlu0 %564
      %566 = vrot.lane.b32.xlu0 %v355, 112
      %v567 = vpop.permute.xlu0 %566
      %v570 = vcombine.high %v352, 0.0
      %v572 = vunpack.c.l.s4 1983009808
      %v573 = vunpack.c.0.s8 %v572
      %v574 = vlaneseq
      %v575 = vshrl.u32 %v574, 7
      %v576 = vsub.s32 %v573, %v575
      %v577 = vrot.slane %v352, %v576
      %v579 = vunpack.c.l.s4 1983009808
      %v580 = vunpack.c.0.s8 %v579
      %v581 = vlaneseq
      %v582 = vshrl.u32 %v581, 7
      %v583 = vsub.s32 %v580, %v582
      %v584 = vrot.slane %v570, %v583
      %v585 = vcombine.high %v565, 0.0
      %v587 = vunpack.c.l.s4 1983009808
      %v588 = vunpack.c.0.s8 %v587
      %v589 = vlaneseq
      %v590 = vshrl.u32 %v589, 7
      %v591 = vsub.s32 %v588, %v590
      %v592 = vrot.slane %v565, %v591
      %v594 = vunpack.c.l.s4 1983009808
      %v595 = vunpack.c.0.s8 %v594
      %v596 = vlaneseq
      %v597 = vshrl.u32 %v596, 7
      %v598 = vsub.s32 %v595, %v597
      %v599 = vrot.slane %v585, %v598
      %v600 = vcombine.low %v577, %v592
      %v601 = vcombine.high %v577, %v592
      %v603 = vunpack.c.l.s4 1934713408
      %v604 = vunpack.c.0.s8 %v603
      %v605 = vlaneseq
      %v606 = vshrl.u32 %v605, 7
      %v607 = vsub.s32 %v604, %v606
      %v608 = vrot.slane %v600, %v607
      %v610 = vunpack.c.l.s4 1934713408
      %v611 = vunpack.c.0.s8 %v610
      %v612 = vlaneseq
      %v613 = vshrl.u32 %v612, 7
      %v614 = vsub.s32 %v611, %v613
      %v615 = vrot.slane %v601, %v614
      %v616 = vcombine.low %v584, %v599
      %v617 = vcombine.high %v584, %v599
      %v619 = vunpack.c.l.s4 1934713408
      %v620 = vunpack.c.0.s8 %v619
      %v621 = vlaneseq
      %v622 = vshrl.u32 %v621, 7
      %v623 = vsub.s32 %v620, %v622
      %v624 = vrot.slane %v616, %v623
      %v626 = vunpack.c.l.s4 1934713408
      %v627 = vunpack.c.0.s8 %v626
      %v628 = vlaneseq
      %v629 = vshrl.u32 %v628, 7
      %v630 = vsub.s32 %v627, %v629
      %v631 = vrot.slane %v617, %v630
      %v632 = vcombine.high %v608, 0.0
      %v633 = vcombine.high %v615, 0.0
      %v634 = vcombine.high %v624, 0.0
      %v635 = vcombine.high %v631, 0.0
      %v636 = vcombine.high %v355, 0.0
      %v638 = vunpack.c.l.s4 1983009808
      %v639 = vunpack.c.0.s8 %v638
      %v640 = vlaneseq
      %v641 = vshrl.u32 %v640, 7
      %v642 = vsub.s32 %v639, %v641
      %v643 = vrot.slane %v355, %v642
      %v645 = vunpack.c.l.s4 1983009808
      %v646 = vunpack.c.0.s8 %v645
      %v647 = vlaneseq
      %v648 = vshrl.u32 %v647, 7
      %v649 = vsub.s32 %v646, %v648
      %v650 = vrot.slane %v636, %v649
      %v651 = vcombine.high %v567, 0.0
      %v653 = vunpack.c.l.s4 1983009808
      %v654 = vunpack.c.0.s8 %v653
      %v655 = vlaneseq
      %v656 = vshrl.u32 %v655, 7
      %v657 = vsub.s32 %v654, %v656
      %v658 = vrot.slane %v567, %v657
      %v660 = vunpack.c.l.s4 1983009808
      %v661 = vunpack.c.0.s8 %v660
      %v662 = vlaneseq
      %v663 = vshrl.u32 %v662, 7
      %v664 = vsub.s32 %v661, %v663
      %v665 = vrot.slane %v651, %v664
      %v666 = vcombine.low %v643, %v658
      %v667 = vcombine.high %v643, %v658
      %v669 = vunpack.c.l.s4 1934713408
      %v670 = vunpack.c.0.s8 %v669
      %v671 = vlaneseq
      %v672 = vshrl.u32 %v671, 7
      %v673 = vsub.s32 %v670, %v672
      %v674 = vrot.slane %v666, %v673
      %v676 = vunpack.c.l.s4 1934713408
      %v677 = vunpack.c.0.s8 %v676
      %v678 = vlaneseq
      %v679 = vshrl.u32 %v678, 7
      %v680 = vsub.s32 %v677, %v679
      %v681 = vrot.slane %v667, %v680
      %v682 = vcombine.low %v650, %v665
      %v683 = vcombine.high %v650, %v665
      %v685 = vunpack.c.l.s4 1934713408
      %v686 = vunpack.c.0.s8 %v685
      %v687 = vlaneseq
      %v688 = vshrl.u32 %v687, 7
      %v689 = vsub.s32 %v686, %v688
      %v690 = vrot.slane %v682, %v689
      %v692 = vunpack.c.l.s4 1934713408
      %v693 = vunpack.c.0.s8 %v692
      %v694 = vlaneseq
      %v695 = vshrl.u32 %v694, 7
      %v696 = vsub.s32 %v693, %v695
      %v697 = vrot.slane %v683, %v696
      %v698 = vcombine.high %v674, 0.0
      %v699 = vcombine.high %v681, 0.0
      %v700 = vcombine.high %v690, 0.0
      %v701 = vcombine.high %v697, 0.0
      %704 = vrot.lane.b32.xlu0 %v416, 112
      %v705 = vpop.permute.xlu0 %704
      %706 = vrot.lane.b32.xlu0 %v419, 112
      %v707 = vpop.permute.xlu0 %706
      %v710 = vcombine.high %v416, 0.0
      %v712 = vunpack.c.l.s4 1983009808
      %v713 = vunpack.c.0.s8 %v712
      %v714 = vlaneseq
      %v715 = vshrl.u32 %v714, 7
      %v716 = vsub.s32 %v713, %v715
      %v717 = vrot.slane %v416, %v716
      %v719 = vunpack.c.l.s4 1983009808
      %v720 = vunpack.c.0.s8 %v719
      %v721 = vlaneseq
      %v722 = vshrl.u32 %v721, 7
      %v723 = vsub.s32 %v720, %v722
      %v724 = vrot.slane %v710, %v723
      %v725 = vcombine.high %v705, 0.0
      %v727 = vunpack.c.l.s4 1983009808
      %v728 = vunpack.c.0.s8 %v727
      %v729 = vlaneseq
      %v730 = vshrl.u32 %v729, 7
      %v731 = vsub.s32 %v728, %v730
      %v732 = vrot.slane %v705, %v731
      %v734 = vunpack.c.l.s4 1983009808
      %v735 = vunpack.c.0.s8 %v734
      %v736 = vlaneseq
      %v737 = vshrl.u32 %v736, 7
      %v738 = vsub.s32 %v735, %v737
      %v739 = vrot.slane %v725, %v738
      %v740 = vcombine.low %v717, %v732
      %v741 = vcombine.high %v717, %v732
      %v743 = vunpack.c.l.s4 1934713408
      %v744 = vunpack.c.0.s8 %v743
      %v745 = vlaneseq
      %v746 = vshrl.u32 %v745, 7
      %v747 = vsub.s32 %v744, %v746
      %v748 = vrot.slane %v740, %v747
      %v750 = vunpack.c.l.s4 1934713408
      %v751 = vunpack.c.0.s8 %v750
      %v752 = vlaneseq
      %v753 = vshrl.u32 %v752, 7
      %v754 = vsub.s32 %v751, %v753
      %v755 = vrot.slane %v741, %v754
      %v756 = vcombine.low %v724, %v739
      %v757 = vcombine.high %v724, %v739
      %v759 = vunpack.c.l.s4 1934713408
      %v760 = vunpack.c.0.s8 %v759
      %v761 = vlaneseq
      %v762 = vshrl.u32 %v761, 7
      %v763 = vsub.s32 %v760, %v762
      %v764 = vrot.slane %v756, %v763
      %v766 = vunpack.c.l.s4 1934713408
      %v767 = vunpack.c.0.s8 %v766
      %v768 = vlaneseq
      %v769 = vshrl.u32 %v768, 7
      %v770 = vsub.s32 %v767, %v769
      %v771 = vrot.slane %v757, %v770
      %v772 = vcombine.high %v748, 0.0
      %v773 = vcombine.high %v755, 0.0
      %v774 = vcombine.high %v764, 0.0
      %v775 = vcombine.high %v771, 0.0
      %v776 = vcombine.high %v419, 0.0
      %v778 = vunpack.c.l.s4 1983009808
      %v779 = vunpack.c.0.s8 %v778
      %v780 = vlaneseq
      %v781 = vshrl.u32 %v780, 7
      %v782 = vsub.s32 %v779, %v781
      %v783 = vrot.slane %v419, %v782
      %v785 = vunpack.c.l.s4 1983009808
      %v786 = vunpack.c.0.s8 %v785
      %v787 = vlaneseq
      %v788 = vshrl.u32 %v787, 7
      %v789 = vsub.s32 %v786, %v788
      %v790 = vrot.slane %v776, %v789
      %v791 = vcombine.high %v707, 0.0
      %v793 = vunpack.c.l.s4 1983009808
      %v794 = vunpack.c.0.s8 %v793
      %v795 = vlaneseq
      %v796 = vshrl.u32 %v795, 7
      %v797 = vsub.s32 %v794, %v796
      %v798 = vrot.slane %v707, %v797
      %v800 = vunpack.c.l.s4 1983009808
      %v801 = vunpack.c.0.s8 %v800
      %v802 = vlaneseq
      %v803 = vshrl.u32 %v802, 7
      %v804 = vsub.s32 %v801, %v803
      %v805 = vrot.slane %v791, %v804
      %v806 = vcombine.low %v783, %v798
      %v807 = vcombine.high %v783, %v798
      %v809 = vunpack.c.l.s4 1934713408
      %v810 = vunpack.c.0.s8 %v809
      %v811 = vlaneseq
      %v812 = vshrl.u32 %v811, 7
      %v813 = vsub.s32 %v810, %v812
      %v814 = vrot.slane %v806, %v813
      %v816 = vunpack.c.l.s4 1934713408
      %v817 = vunpack.c.0.s8 %v816
      %v818 = vlaneseq
      %v819 = vshrl.u32 %v818, 7
      %v820 = vsub.s32 %v817, %v819
      %v821 = vrot.slane %v807, %v820
      %v822 = vcombine.low %v790, %v805
      %v823 = vcombine.high %v790, %v805
      %v825 = vunpack.c.l.s4 1934713408
      %v826 = vunpack.c.0.s8 %v825
      %v827 = vlaneseq
      %v828 = vshrl.u32 %v827, 7
      %v829 = vsub.s32 %v826, %v828
      %v830 = vrot.slane %v822, %v829
      %v832 = vunpack.c.l.s4 1934713408
      %v833 = vunpack.c.0.s8 %v832
      %v834 = vlaneseq
      %v835 = vshrl.u32 %v834, 7
      %v836 = vsub.s32 %v833, %v835
      %v837 = vrot.slane %v823, %v836
      %v838 = vcombine.high %v814, 0.0
      %v839 = vcombine.high %v821, 0.0
      %v840 = vcombine.high %v830, 0.0
      %v841 = vcombine.high %v837, 0.0
      %v842 = vcombine.low %v468, %v475
      %v844 = vunpack.c.l.s4 1983009808
      %v845 = vunpack.c.0.s8 %v844
      %v846 = vlaneseq
      %v847 = vshrl.u32 %v846, 7
      %v848 = vsub.s32 %v845, %v847
      %v849 = vrot.slane %v842, %v848
      %v850 = vcombine.low %v492, %v493
      %v852 = vunpack.c.l.s4 1983009808
      %v853 = vunpack.c.0.s8 %v852
      %v854 = vlaneseq
      %v855 = vshrl.u32 %v854, 7
      %v856 = vsub.s32 %v853, %v855
      %v857 = vrot.slane %v850, %v856
      %v858 = vcombine.low %v484, %v491
      %v860 = vunpack.c.l.s4 1983009808
      %v861 = vunpack.c.0.s8 %v860
      %v862 = vlaneseq
      %v863 = vshrl.u32 %v862, 7
      %v864 = vsub.s32 %v861, %v863
      %v865 = vrot.slane %v858, %v864
      %v866 = vcombine.low %v494, %v495
      %v868 = vunpack.c.l.s4 1983009808
      %v869 = vunpack.c.0.s8 %v868
      %v870 = vlaneseq
      %v871 = vshrl.u32 %v870, 7
      %v872 = vsub.s32 %v869, %v871
      %v873 = vrot.slane %v866, %v872
      %v874 = vcombine.low %v849, %v857
      %v876 = vunpack.c.l.s4 1934713408
      %v877 = vunpack.c.0.s8 %v876
      %v878 = vlaneseq
      %v879 = vshrl.u32 %v878, 7
      %v880 = vsub.s32 %v877, %v879
      %v881 = vrot.slane %v874, %v880
      %v882 = vcombine.low %v865, %v873
      %v884 = vunpack.c.l.s4 1934713408
      %v885 = vunpack.c.0.s8 %v884
      %v886 = vlaneseq
      %v887 = vshrl.u32 %v886, 7
      %v888 = vsub.s32 %v885, %v887
      %v889 = vrot.slane %v882, %v888
      %v890 = vcombine.low %v881, %v889
      %v891 = vcombine.high %v881, %v889
      %v892 = vpack.c.bf16 %v890, %v890
      %v893 = vpack.c.bf16 %v891, %v891
      %v894 = vcombine.low %v608, %v615
      %v896 = vunpack.c.l.s4 1983009808
      %v897 = vunpack.c.0.s8 %v896
      %v898 = vlaneseq
      %v899 = vshrl.u32 %v898, 7
      %v900 = vsub.s32 %v897, %v899
      %v901 = vrot.slane %v894, %v900
      %v902 = vcombine.low %v632, %v633
      %v904 = vunpack.c.l.s4 1983009808
      %v905 = vunpack.c.0.s8 %v904
      %v906 = vlaneseq
      %v907 = vshrl.u32 %v906, 7
      %v908 = vsub.s32 %v905, %v907
      %v909 = vrot.slane %v902, %v908
      %v910 = vcombine.low %v624, %v631
      %v912 = vunpack.c.l.s4 1983009808
      %v913 = vunpack.c.0.s8 %v912
      %v914 = vlaneseq
      %v915 = vshrl.u32 %v914, 7
      %v916 = vsub.s32 %v913, %v915
      %v917 = vrot.slane %v910, %v916
      %v918 = vcombine.low %v634, %v635
      %v920 = vunpack.c.l.s4 1983009808
      %v921 = vunpack.c.0.s8 %v920
      %v922 = vlaneseq
      %v923 = vshrl.u32 %v922, 7
      %v924 = vsub.s32 %v921, %v923
      %v925 = vrot.slane %v918, %v924
      %v926 = vcombine.low %v901, %v909
      %v928 = vunpack.c.l.s4 1934713408
      %v929 = vunpack.c.0.s8 %v928
      %v930 = vlaneseq
      %v931 = vshrl.u32 %v930, 7
      %v932 = vsub.s32 %v929, %v931
      %v933 = vrot.slane %v926, %v932
      %v934 = vcombine.low %v917, %v925
      %v936 = vunpack.c.l.s4 1934713408
      %v937 = vunpack.c.0.s8 %v936
      %v938 = vlaneseq
      %v939 = vshrl.u32 %v938, 7
      %v940 = vsub.s32 %v937, %v939
      %v941 = vrot.slane %v934, %v940
      %v942 = vcombine.low %v933, %v941
      %v943 = vcombine.high %v933, %v941
      %v944 = vpack.c.bf16 %v942, %v942
      %v945 = vpack.c.bf16 %v943, %v943
      %v946 = vcombine.low %v748, %v755
      %v948 = vunpack.c.l.s4 1983009808
      %v949 = vunpack.c.0.s8 %v948
      %v950 = vlaneseq
      %v951 = vshrl.u32 %v950, 7
      %v952 = vsub.s32 %v949, %v951
      %v953 = vrot.slane %v946, %v952
      %v954 = vcombine.low %v772, %v773
      %v956 = vunpack.c.l.s4 1983009808
      %v957 = vunpack.c.0.s8 %v956
      %v958 = vlaneseq
      %v959 = vshrl.u32 %v958, 7
      %v960 = vsub.s32 %v957, %v959
      %v961 = vrot.slane %v954, %v960
      %v962 = vcombine.low %v764, %v771
      %v964 = vunpack.c.l.s4 1983009808
      %v965 = vunpack.c.0.s8 %v964
      %v966 = vlaneseq
      %v967 = vshrl.u32 %v966, 7
      %v968 = vsub.s32 %v965, %v967
      %v969 = vrot.slane %v962, %v968
      %v970 = vcombine.low %v774, %v775
      %v972 = vunpack.c.l.s4 1983009808
      %v973 = vunpack.c.0.s8 %v972
      %v974 = vlaneseq
      %v975 = vshrl.u32 %v974, 7
      %v976 = vsub.s32 %v973, %v975
      %v977 = vrot.slane %v970, %v976
      %v978 = vcombine.low %v953, %v961
      %v980 = vunpack.c.l.s4 1934713408
      %v981 = vunpack.c.0.s8 %v980
      %v982 = vlaneseq
      %v983 = vshrl.u32 %v982, 7
      %v984 = vsub.s32 %v981, %v983
      %v985 = vrot.slane %v978, %v984
      %v986 = vcombine.low %v969, %v977
      %v988 = vunpack.c.l.s4 1934713408
      %v989 = vunpack.c.0.s8 %v988
      %v990 = vlaneseq
      %v991 = vshrl.u32 %v990, 7
      %v992 = vsub.s32 %v989, %v991
      %v993 = vrot.slane %v986, %v992
      %v994 = vcombine.low %v985, %v993
      %v995 = vcombine.high %v985, %v993
      %v996 = vpack.c.bf16 %v994, %v994
      %v997 = vpack.c.bf16 %v995, %v995
      %vm998 = vcmask 130048
      %v1000 = vsel %vm998, %v892, 0
      %v1003 = vsel %vm998, %v944, 0
      %1005 = vmatprep.subr.bf16.mxu0 0
      %1006 = vmatpush1.bf16.xpose.msra.mxu0 0
      %1007 = vmatprep.subr.bf16.mxu0 0
      %1008 = vmatpush1.bf16.xpose.msra.mxu0 0
      %1009 = vmatprep.subr.bf16.mxu0 0
      %1010 = vmatpush1.bf16.xpose.msra.mxu0 0
      %1011 = vmatprep.subr.bf16.mxu0 0
      %1012 = vmatpush1.bf16.xpose.msra.mxu0 0
      %1013 = vmatprep.subr.bf16.mxu0 0
      %1014 = vmatpush1.bf16.xpose.msra.mxu0 0
      %1015 = vmatprep.subr.bf16.mxu0 0
      %1016 = vmatpush1.bf16.xpose.msra.mxu0 0
      %1017 = vmatprep.subr.bf16.mxu0 0
      %1018 = vmatpush1.bf16.xpose.msra.mxu0 0
      %1019 = vmatprep.subr.bf16.mxu0 0
      %1020 = vmatpush1.bf16.xpose.msra.mxu0 %v1003
      %1021 = vmatprep.subr.bf16.mxu0 0
      %1022 = vmatpush2.bf16.xpose.msra.mxu0 0
      %1023 = vmatprep.subr.bf16.mxu0 0
      %1024 = vmatpush2.bf16.xpose.msra.mxu0 0
      %1025 = vmatprep.subr.bf16.mxu0 0
      %1026 = vmatpush2.bf16.xpose.msra.mxu0 0
      %1027 = vmatprep.subr.bf16.mxu0 0
      %1028 = vmatpush2.bf16.xpose.msra.mxu0 0
      %1029 = vmatprep.subr.bf16.mxu0 0
      %1030 = vmatpush2.bf16.xpose.msra.mxu0 0
      %1031 = vmatprep.subr.bf16.mxu0 0
      %1032 = vmatpush2.bf16.xpose.msra.mxu0 0
      %1033 = vmatprep.subr.bf16.mxu0 0
      %1034 = vmatpush2.bf16.xpose.msra.mxu0 0
      %1035 = vmatprep.subr.bf16.mxu0 0
      %1036 = vmatpush2.bf16.xpose.msra.mxu0 0
      %1037 = vmatprep.mubr.bf16.mxu0 0
      %1038 = vmatmul.mubr.bf16.gmra.mxu0 %v1000
      %v1039 = vpop.f32.mrf.mxu0
      %v1040 = vadd.f32 0.0, %v1039
      %v1041 = vpop.f32.mrf.mxu0
      %v1042 = vpop.f32.mrf.mxu0
      %v1043 = vpop.f32.mrf.mxu0
      %1044 = vdwg.mxu0
      %v1046 = vsel %vm998, %v893, 0
      %v1049 = vsel %vm998, %v945, 0
      %1051 = vmatprep.subr.bf16.mxu0 0
      %1052 = vmatpush1.bf16.xpose.msra.mxu0 0
      %1053 = vmatprep.subr.bf16.mxu0 0
      %1054 = vmatpush1.bf16.xpose.msra.mxu0 0
      %1055 = vmatprep.subr.bf16.mxu0 0
      %1056 = vmatpush1.bf16.xpose.msra.mxu0 0
      %1057 = vmatprep.subr.bf16.mxu0 0
      %1058 = vmatpush1.bf16.xpose.msra.mxu0 0
      %1059 = vmatprep.subr.bf16.mxu0 0
      %1060 = vmatpush1.bf16.xpose.msra.mxu0 0
      %1061 = vmatprep.subr.bf16.mxu0 0
      %1062 = vmatpush1.bf16.xpose.msra.mxu0 0
      %1063 = vmatprep.subr.bf16.mxu0 0
      %1064 = vmatpush1.bf16.xpose.msra.mxu0 0
      %1065 = vmatprep.subr.bf16.mxu0 0
      %1066 = vmatpush1.bf16.xpose.msra.mxu0 %v1049
      %1067 = vmatprep.subr.bf16.mxu0 0
      %1068 = vmatpush2.bf16.xpose.msra.mxu0 0
      %1069 = vmatprep.subr.bf16.mxu0 0
      %1070 = vmatpush2.bf16.xpose.msra.mxu0 0
      %1071 = vmatprep.subr.bf16.mxu0 0
      %1072 = vmatpush2.bf16.xpose.msra.mxu0 0
      %1073 = vmatprep.subr.bf16.mxu0 0
      %1074 = vmatpush2.bf16.xpose.msra.mxu0 0
      %1075 = vmatprep.subr.bf16.mxu0 0
      %1076 = vmatpush2.bf16.xpose.msra.mxu0 0
      %1077 = vmatprep.subr.bf16.mxu0 0
      %1078 = vmatpush2.bf16.xpose.msra.mxu0 0
      %1079 = vmatprep.subr.bf16.mxu0 0
      %1080 = vmatpush2.bf16.xpose.msra.mxu0 0
      %1081 = vmatprep.subr.bf16.mxu0 0
      %1082 = vmatpush2.bf16.xpose.msra.mxu0 0
      %1083 = vmatprep.mubr.bf16.mxu0 0
      %1084 = vmatmul.mubr.bf16.gmra.mxu0 %v1046
      %v1085 = vpop.f32.mrf.mxu0
      %v1086 = vadd.f32 0.0, %v1085
      %v1087 = vpop.f32.mrf.mxu0
      %v1088 = vpop.f32.mrf.mxu0
      %v1089 = vpop.f32.mrf.mxu0
      %1090 = vdwg.mxu0
      %v1091 = vmul.f32 %v1040, 0.25
      %v1092 = vmul.f32 %v1086, 0.25
      %v1094 = vlaneseq
      %v1095 = vshrl.u32 %v1094, 7
      %v1096 = vsub.s32 0, %v1095
      %v1097 = vrot.slane %v220, %v1096
      %v1099 = vadd.f32 %v1091, %v1097
      %v1100 = vadd.f32 %v1092, %v1097
      %vm1101 = vcmask 64512
      %v1102 = vsel %vm1101, %v1099, -inf
      %1103 = vmax.xlane.f32.xlu0 %v1102
      %v1104 = vpop.xlane.xlu0 %1103
      %v1105 = vsel %vm1101, %v1100, -inf
      %1106 = vmax.xlane.f32.xlu0 %v1105
      %v1107 = vpop.xlane.xlu0 %1106
      %v1108 = vsub.f32 %v1099, %v1104
      %v1109 = vsub.f32 %v1100, %v1107
      %v1110 = vmul.f32 %v1108, 1.442695
      %v1111 = vpow.pop %v1110
      %v1112 = vmul.f32 %v1109, 1.442695
      %v1113 = vpow.pop %v1112
      %v1114 = vsel %vm1101, %v1111, 0.0
      %1115 = vadd.xlane.f32.xlu0 %v1114
      %v1116 = vpop.xlane.xlu0 %1115
      %v1117 = vsel %vm1101, %v1113, 0.0
      %1118 = vadd.xlane.f32.xlu0 %v1117
      %v1119 = vpop.xlane.xlu0 %1118
      %v1120 = vrcp.pop %v1116
      %v1121 = vrcp.pop %v1119
      %v1122 = vmul.f32 %v1111, %v1120
      %v1123 = vmul.f32 %v1113, %v1121
      %v1124 = vpack.c.bf16 %v1122, %v1122
      %v1125 = vpack.c.bf16 %v1123, %v1123
      %v1127 = vsel %vm1101, %v1124, 0
      %vm1129 = vcmask 1043456
      %v1131 = vsel %vm1129, %v996, 0
      %1133 = vmatprep.subr.bf16.mxu0 0
      %1134 = vmatpush1.bf16.msra.mxu0 0
      %1135 = vmatprep.subr.bf16.mxu0 0
      %1136 = vmatpush1.bf16.msra.mxu0 0
      %1137 = vmatprep.subr.bf16.mxu0 0
      %1138 = vmatpush1.bf16.msra.mxu0 0
      %1139 = vmatprep.subr.bf16.mxu0 0
      %1140 = vmatpush1.bf16.msra.mxu0 0
      %1141 = vmatprep.subr.bf16.mxu0 0
      %1142 = vmatpush1.bf16.msra.mxu0 0
      %1143 = vmatprep.subr.bf16.mxu0 0
      %1144 = vmatpush1.bf16.msra.mxu0 0
      %1145 = vmatprep.subr.bf16.mxu0 0
      %1146 = vmatpush1.bf16.msra.mxu0 0
      %1147 = vmatprep.subr.bf16.mxu0 0
      %1148 = vmatpush1.bf16.msra.mxu0 %v1131
      %1149 = vmatprep.subr.bf16.mxu0 0
      %1150 = vmatpush2.bf16.msra.mxu0 0
      %1151 = vmatprep.subr.bf16.mxu0 0
      %1152 = vmatpush2.bf16.msra.mxu0 0
      %1153 = vmatprep.subr.bf16.mxu0 0
      %1154 = vmatpush2.bf16.msra.mxu0 0
      %1155 = vmatprep.subr.bf16.mxu0 0
      %1156 = vmatpush2.bf16.msra.mxu0 0
      %1157 = vmatprep.subr.bf16.mxu0 0
      %1158 = vmatpush2.bf16.msra.mxu0 0
      %1159 = vmatprep.subr.bf16.mxu0 0
      %1160 = vmatpush2.bf16.msra.mxu0 0
      %1161 = vmatprep.subr.bf16.mxu0 0
      %1162 = vmatpush2.bf16.msra.mxu0 0
      %1163 = vmatprep.subr.bf16.mxu0 0
      %1164 = vmatpush2.bf16.msra.mxu0 0
      %1165 = vmatprep.mubr.bf16.mxu0 0
      %1166 = vmatmul.mubr.bf16.gmra.mxu0 %v1127
      %v1167 = vpop.f32.mrf.mxu0
      %v1168 = vadd.f32 0.0, %v1167
      %v1169 = vpop.f32.mrf.mxu0
      %v1170 = vpop.f32.mrf.mxu0
      %v1171 = vpop.f32.mrf.mxu0
      %1172 = vdwg.mxu0
      %v1174 = vsel %vm1101, %v1125, 0
      %v1177 = vsel %vm1129, %v997, 0
      %1179 = vmatprep.subr.bf16.mxu0 0
      %1180 = vmatpush1.bf16.msra.mxu0 0
      %1181 = vmatprep.subr.bf16.mxu0 0
      %1182 = vmatpush1.bf16.msra.mxu0 0
      %1183 = vmatprep.subr.bf16.mxu0 0
      %1184 = vmatpush1.bf16.msra.mxu0 0
      %1185 = vmatprep.subr.bf16.mxu0 0
      %1186 = vmatpush1.bf16.msra.mxu0 0
      %1187 = vmatprep.subr.bf16.mxu0 0
      %1188 = vmatpush1.bf16.msra.mxu0 0
      %1189 = vmatprep.subr.bf16.mxu0 0
      %1190 = vmatpush1.bf16.msra.mxu0 0
      %1191 = vmatprep.subr.bf16.mxu0 0
      %1192 = vmatpush1.bf16.msra.mxu0 0
      %1193 = vmatprep.subr.bf16.mxu0 0
      %1194 = vmatpush1.bf16.msra.mxu0 %v1177
      %1195 = vmatprep.subr.bf16.mxu0 0
      %1196 = vmatpush2.bf16.msra.mxu0 0
      %1197 = vmatprep.subr.bf16.mxu0 0
      %1198 = vmatpush2.bf16.msra.mxu0 0
      %1199 = vmatprep.subr.bf16.mxu0 0
      %1200 = vmatpush2.bf16.msra.mxu0 0
      %1201 = vmatprep.subr.bf16.mxu0 0
      %1202 = vmatpush2.bf16.msra.mxu0 0
      %1203 = vmatprep.subr.bf16.mxu0 0
      %1204 = vmatpush2.bf16.msra.mxu0 0
      %1205 = vmatprep.subr.bf16.mxu0 0
      %1206 = vmatpush2.bf16.msra.mxu0 0
      %1207 = vmatprep.subr.bf16.mxu0 0
      %1208 = vmatpush2.bf16.msra.mxu0 0
      %1209 = vmatprep.subr.bf16.mxu0 0
      %1210 = vmatpush2.bf16.msra.mxu0 0
      %1211 = vmatprep.mubr.bf16.mxu0 0
      %1212 = vmatmul.mubr.bf16.gmra.mxu0 %v1174
      %v1213 = vpop.f32.mrf.mxu0
      %v1214 = vadd.f32 0.0, %v1213
      %v1215 = vpop.f32.mrf.mxu0
      %v1216 = vpop.f32.mrf.mxu0
      %v1217 = vpop.f32.mrf.mxu0
      %1218 = vdwg.mxu0
      %v1219 = vcombine.high %v1168, 0.0
      %v1221 = vunpack.c.l.s4 1983009808
      %v1222 = vunpack.c.0.s8 %v1221
      %v1223 = vlaneseq
      %v1224 = vshrl.u32 %v1223, 7
      %v1225 = vsub.s32 %v1222, %v1224
      %v1226 = vrot.slane %v1168, %v1225
      %v1228 = vunpack.c.l.s4 1983009808
      %v1229 = vunpack.c.0.s8 %v1228
      %v1230 = vlaneseq
      %v1231 = vshrl.u32 %v1230, 7
      %v1232 = vsub.s32 %v1229, %v1231
      %v1233 = vrot.slane %v1219, %v1232
      %v1234 = vcombine.high %v1214, 0.0
      %v1236 = vunpack.c.l.s4 1983009808
      %v1237 = vunpack.c.0.s8 %v1236
      %v1238 = vlaneseq
      %v1239 = vshrl.u32 %v1238, 7
      %v1240 = vsub.s32 %v1237, %v1239
      %v1241 = vrot.slane %v1214, %v1240
      %v1243 = vunpack.c.l.s4 1983009808
      %v1244 = vunpack.c.0.s8 %v1243
      %v1245 = vlaneseq
      %v1246 = vshrl.u32 %v1245, 7
      %v1247 = vsub.s32 %v1244, %v1246
      %v1248 = vrot.slane %v1234, %v1247
      %v1249 = vcombine.low %v1226, %v1241
      %v1250 = vcombine.high %v1226, %v1241
      %v1252 = vunpack.c.l.s4 1934713408
      %v1253 = vunpack.c.0.s8 %v1252
      %v1254 = vlaneseq
      %v1255 = vshrl.u32 %v1254, 7
      %v1256 = vsub.s32 %v1253, %v1255
      %v1257 = vrot.slane %v1249, %v1256
      %v1259 = vunpack.c.l.s4 1934713408
      %v1260 = vunpack.c.0.s8 %v1259
      %v1261 = vlaneseq
      %v1262 = vshrl.u32 %v1261, 7
      %v1263 = vsub.s32 %v1260, %v1262
      %v1264 = vrot.slane %v1250, %v1263
      %v1265 = vcombine.low %v1233, %v1248
      %v1266 = vcombine.high %v1233, %v1248
      %v1268 = vunpack.c.l.s4 1934713408
      %v1269 = vunpack.c.0.s8 %v1268
      %v1270 = vlaneseq
      %v1271 = vshrl.u32 %v1270, 7
      %v1272 = vsub.s32 %v1269, %v1271
      %v1273 = vrot.slane %v1265, %v1272
      %v1275 = vunpack.c.l.s4 1934713408
      %v1276 = vunpack.c.0.s8 %v1275
      %v1277 = vlaneseq
      %v1278 = vshrl.u32 %v1277, 7
      %v1279 = vsub.s32 %v1276, %v1278
      %v1280 = vrot.slane %v1266, %v1279
      %v1281 = vcombine.high %v1257, 0.0
      %v1282 = vcombine.high %v1264, 0.0
      %v1283 = vcombine.high %v1273, 0.0
      %v1284 = vcombine.high %v1280, 0.0
      %v1285 = vcombine.low %v1257, %v1264
      %v1287 = vunpack.c.l.s4 1983009808
      %v1288 = vunpack.c.0.s8 %v1287
      %v1289 = vlaneseq
      %v1290 = vshrl.u32 %v1289, 7
      %v1291 = vsub.s32 %v1288, %v1290
      %v1292 = vrot.slane %v1285, %v1291
      %v1293 = vcombine.low %v1281, %v1282
      %v1295 = vunpack.c.l.s4 1983009808
      %v1296 = vunpack.c.0.s8 %v1295
      %v1297 = vlaneseq
      %v1298 = vshrl.u32 %v1297, 7
      %v1299 = vsub.s32 %v1296, %v1298
      %v1300 = vrot.slane %v1293, %v1299
      %v1301 = vcombine.low %v1273, %v1280
      %v1303 = vunpack.c.l.s4 1983009808
      %v1304 = vunpack.c.0.s8 %v1303
      %v1305 = vlaneseq
      %v1306 = vshrl.u32 %v1305, 7
      %v1307 = vsub.s32 %v1304, %v1306
      %v1308 = vrot.slane %v1301, %v1307
      %v1309 = vcombine.low %v1283, %v1284
      %v1311 = vunpack.c.l.s4 1983009808
      %v1312 = vunpack.c.0.s8 %v1311
      %v1313 = vlaneseq
      %v1314 = vshrl.u32 %v1313, 7
      %v1315 = vsub.s32 %v1312, %v1314
      %v1316 = vrot.slane %v1309, %v1315
      %v1317 = vcombine.low %v1292, %v1300
      %v1319 = vunpack.c.l.s4 1934713408
      %v1320 = vunpack.c.0.s8 %v1319
      %v1321 = vlaneseq
      %v1322 = vshrl.u32 %v1321, 7
      %v1323 = vsub.s32 %v1320, %v1322
      %v1324 = vrot.slane %v1317, %v1323
      %v1325 = vcombine.low %v1308, %v1316
      %v1327 = vunpack.c.l.s4 1934713408
      %v1328 = vunpack.c.0.s8 %v1327
      %v1329 = vlaneseq
      %v1330 = vshrl.u32 %v1329, 7
      %v1331 = vsub.s32 %v1328, %v1330
      %v1332 = vrot.slane %v1325, %v1331
      %v1333 = vcombine.low %v1324, %v1332
      %v1334 = vcombine.high %v1324, %v1332
      %1336 = vrot.lane.b32.xlu0 %v1334, 16
      %v1337 = vpop.permute.xlu0 %1336
      %v1339 = vsel %vm998, %v1333, %v1337
      %v1340 = vpack.c.bf16 %v1339, %v1339
      %v1341 = vld [vmem:[%s10] sm:$0xf]
      %v1342 = vld [vmem:[%s10 + $0x4] sm:$0xf]
      %v1343 = vld [vmem:[%s10 + $0x8] sm:$0xf]
      %v1344 = vld [vmem:[%s10 + $0xc] sm:$0xf]
      %v1345 = vld [vmem:[%s11] sm:$0x1]
      %v1347 = vlaneseq
      %v1348 = vshrl.u32 %v1347, 7
      %v1349 = vsub.s32 0, %v1348
      %v1350 = vrot.slane %v1345, %v1349
      %v1356 = vunpack.c.l.b16 %v1341
      %v1357 = vunpack.c.l.b16 %v1342
      %v1358 = vunpack.c.l.b16 %v1343
      %v1359 = vunpack.c.l.b16 %v1344
      %v1360 = vpack.c.b16 %v1357, %v1356
      %v1361 = vpack.c.b16 %v1359, %v1358
      %v1365 = vsel %vm174, %v1340, 0
      %1367 = vmatprep.subr.bf16.mxu0 0
      %1368 = vmatpush1.bf16.msra.mxu0 0
      %1369 = vmatprep.subr.bf16.mxu0 0
      %1370 = vmatpush1.bf16.msra.mxu0 0
      %1371 = vmatprep.subr.bf16.mxu0 0
      %1372 = vmatpush1.bf16.msra.mxu0 0
      %1373 = vmatprep.subr.bf16.mxu0 0
      %1374 = vmatpush1.bf16.msra.mxu0 0
      %1375 = vmatprep.subr.bf16.mxu0 0
      %1376 = vmatpush1.bf16.msra.mxu0 0
      %1377 = vmatprep.subr.bf16.mxu0 0
      %1378 = vmatpush1.bf16.msra.mxu0 0
      %1379 = vmatprep.subr.bf16.mxu0 0
      %1380 = vmatpush1.bf16.msra.mxu0 %v1361
      %1381 = vmatprep.subr.bf16.mxu0 0
      %1382 = vmatpush1.bf16.msra.mxu0 %v1360
      %1383 = vmatprep.subr.bf16.mxu0 0
      %1384 = vmatpush2.bf16.msra.mxu0 0
      %1385 = vmatprep.subr.bf16.mxu0 0
      %1386 = vmatpush2.bf16.msra.mxu0 0
      %1387 = vmatprep.subr.bf16.mxu0 0
      %1388 = vmatpush2.bf16.msra.mxu0 0
      %1389 = vmatprep.subr.bf16.mxu0 0
      %1390 = vmatpush2.bf16.msra.mxu0 0
      %1391 = vmatprep.subr.bf16.mxu0 0
      %1392 = vmatpush2.bf16.msra.mxu0 0
      %1393 = vmatprep.subr.bf16.mxu0 0
      %1394 = vmatpush2.bf16.msra.mxu0 0
      %1395 = vmatprep.subr.bf16.mxu0 0
      %1396 = vmatpush2.bf16.msra.mxu0 0
      %1397 = vmatprep.subr.bf16.mxu0 0
      %1398 = vmatpush2.bf16.msra.mxu0 0
      %1399 = vmatprep.mubr.bf16.mxu0 0
      %1400 = vmatmul.mubr.bf16.gmra.mxu0 %v1365
      %v1401 = vpop.f32.mrf.mxu0
      %v1402 = vadd.f32 %v1350, %v1401
      %v1403 = vpop.f32.mrf.mxu0
      %v1404 = vpop.f32.mrf.mxu0
      %v1405 = vpop.f32.mrf.mxu0
      %1406 = vdwg.mxu0
      %v1407 = vadd.f32 %v1402, %v216
      %v1408 = vld [vmem:[%s12] sm:$0x1]
      %v1409 = vld [vmem:[%s13] sm:$0x1]
      %v1410 = vsel %vm174, %v1407, 0.0
      %1411 = vadd.xlane.f32.xlu0 %v1410
      %v1412 = vpop.xlane.xlu0 %1411
      %v1413 = vmul.f32 %v1412, %v181
      %v1414 = vsub.f32 %v1407, %v1413
      %v1415 = vmul.f32 %v1414, %v1414
      %v1416 = vsel %vm174, %v1415, 0.0
      %1417 = vadd.xlane.f32.xlu0 %v1416
      %v1418 = vpop.xlane.xlu0 %1417
      %v1419 = vmul.f32 %v1418, %v181
      %v1420 = vadd.f32 %v1419, 1e-12
      %v1421 = vrsqrt.pop %v1420
      %v1422 = vmul.f32 %v1414, %v1421
      %v1424 = vlaneseq
      %v1425 = vshrl.u32 %v1424, 7
      %v1426 = vsub.s32 0, %v1425
      %v1427 = vrot.slane %v1408, %v1426
      %v1429 = vmul.f32 %v1422, %v1427
      %v1431 = vlaneseq
      %v1432 = vshrl.u32 %v1431, 7
      %v1433 = vsub.s32 0, %v1432
      %v1434 = vrot.slane %v1409, %v1433
      %v1436 = vadd.f32 %v1429, %v1434
      %1437 = vst.msk [vmem:[#allocation2] sm:$0xff] %vm174, %v1436
      %v1438 = vpack.c.bf16 %v1436, %v1436
      %vm1439 = vcmask 257024
      %1440 = vst.msk [vmem:[#allocation3] sm:$0xf] %vm1439, %v1438
      %v1441 = vcombine.low %v534, %v541
      %v1443 = vunpack.c.l.s4 1983009808
      %v1444 = vunpack.c.0.s8 %v1443
      %v1445 = vlaneseq
      %v1446 = vshrl.u32 %v1445, 7
      %v1447 = vsub.s32 %v1444, %v1446
      %v1448 = vrot.slane %v1441, %v1447
      %v1449 = vcombine.low %v558, %v559
      %v1451 = vunpack.c.l.s4 1983009808
      %v1452 = vunpack.c.0.s8 %v1451
      %v1453 = vlaneseq
      %v1454 = vshrl.u32 %v1453, 7
      %v1455 = vsub.s32 %v1452, %v1454
      %v1456 = vrot.slane %v1449, %v1455
      %v1457 = vcombine.low %v550, %v557
      %v1459 = vunpack.c.l.s4 1983009808
      %v1460 = vunpack.c.0.s8 %v1459
      %v1461 = vlaneseq
      %v1462 = vshrl.u32 %v1461, 7
      %v1463 = vsub.s32 %v1460, %v1462
      %v1464 = vrot.slane %v1457, %v1463
      %v1465 = vcombine.low %v560, %v561
      %v1467 = vunpack.c.l.s4 1983009808
      %v1468 = vunpack.c.0.s8 %v1467
      %v1469 = vlaneseq
      %v1470 = vshrl.u32 %v1469, 7
      %v1471 = vsub.s32 %v1468, %v1470
      %v1472 = vrot.slane %v1465, %v1471
      %v1473 = vcombine.low %v1448, %v1456
      %v1475 = vunpack.c.l.s4 1934713408
      %v1476 = vunpack.c.0.s8 %v1475
      %v1477 = vlaneseq
      %v1478 = vshrl.u32 %v1477, 7
      %v1479 = vsub.s32 %v1476, %v1478
      %v1480 = vrot.slane %v1473, %v1479
      %v1481 = vcombine.low %v1464, %v1472
      %v1483 = vunpack.c.l.s4 1934713408
      %v1484 = vunpack.c.0.s8 %v1483
      %v1485 = vlaneseq
      %v1486 = vshrl.u32 %v1485, 7
      %v1487 = vsub.s32 %v1484, %v1486
      %v1488 = vrot.slane %v1481, %v1487
      %v1489 = vcombine.low %v1480, %v1488
      %v1490 = vcombine.high %v1480, %v1488
      %v1491 = vpack.c.bf16 %v1489, %v1489
      %v1492 = vpack.c.bf16 %v1490, %v1490
      %v1493 = vcombine.low %v674, %v681
      %v1495 = vunpack.c.l.s4 1983009808
      %v1496 = vunpack.c.0.s8 %v1495
      %v1497 = vlaneseq
      %v1498 = vshrl.u32 %v1497, 7
      %v1499 = vsub.s32 %v1496, %v1498
      %v1500 = vrot.slane %v1493, %v1499
      %v1501 = vcombine.low %v698, %v699
      %v1503 = vunpack.c.l.s4 1983009808
      %v1504 = vunpack.c.0.s8 %v1503
      %v1505 = vlaneseq
      %v1506 = vshrl.u32 %v1505, 7
      %v1507 = vsub.s32 %v1504, %v1506
      %v1508 = vrot.slane %v1501, %v1507
      %v1509 = vcombine.low %v690, %v697
      %v1511 = vunpack.c.l.s4 1983009808
      %v1512 = vunpack.c.0.s8 %v1511
      %v1513 = vlaneseq
      %v1514 = vshrl.u32 %v1513, 7
      %v1515 = vsub.s32 %v1512, %v1514
      %v1516 = vrot.slane %v1509, %v1515
      %v1517 = vcombine.low %v700, %v701
      %v1519 = vunpack.c.l.s4 1983009808
      %v1520 = vunpack.c.0.s8 %v1519
      %v1521 = vlaneseq
      %v1522 = vshrl.u32 %v1521, 7
      %v1523 = vsub.s32 %v1520, %v1522
      %v1524 = vrot.slane %v1517, %v1523
      %v1525 = vcombine.low %v1500, %v1508
      %v1527 = vunpack.c.l.s4 1934713408
      %v1528 = vunpack.c.0.s8 %v1527
      %v1529 = vlaneseq
      %v1530 = vshrl.u32 %v1529, 7
      %v1531 = vsub.s32 %v1528, %v1530
      %v1532 = vrot.slane %v1525, %v1531
      %v1533 = vcombine.low %v1516, %v1524
      %v1535 = vunpack.c.l.s4 1934713408
      %v1536 = vunpack.c.0.s8 %v1535
      %v1537 = vlaneseq
      %v1538 = vshrl.u32 %v1537, 7
      %v1539 = vsub.s32 %v1536, %v1538
      %v1540 = vrot.slane %v1533, %v1539
      %v1541 = vcombine.low %v1532, %v1540
      %v1542 = vcombine.high %v1532, %v1540
      %v1543 = vpack.c.bf16 %v1541, %v1541
      %v1544 = vpack.c.bf16 %v1542, %v1542
      %v1545 = vcombine.low %v814, %v821
      %v1547 = vunpack.c.l.s4 1983009808
      %v1548 = vunpack.c.0.s8 %v1547
      %v1549 = vlaneseq
      %v1550 = vshrl.u32 %v1549, 7
      %v1551 = vsub.s32 %v1548, %v1550
      %v1552 = vrot.slane %v1545, %v1551
      %v1553 = vcombine.low %v838, %v839
      %v1555 = vunpack.c.l.s4 1983009808
      %v1556 = vunpack.c.0.s8 %v1555
      %v1557 = vlaneseq
      %v1558 = vshrl.u32 %v1557, 7
      %v1559 = vsub.s32 %v1556, %v1558
      %v1560 = vrot.slane %v1553, %v1559
      %v1561 = vcombine.low %v830, %v837
      %v1563 = vunpack.c.l.s4 1983009808
      %v1564 = vunpack.c.0.s8 %v1563
      %v1565 = vlaneseq
      %v1566 = vshrl.u32 %v1565, 7
      %v1567 = vsub.s32 %v1564, %v1566
      %v1568 = vrot.slane %v1561, %v1567
      %v1569 = vcombine.low %v840, %v841
      %v1571 = vunpack.c.l.s4 1983009808
      %v1572 = vunpack.c.0.s8 %v1571
      %v1573 = vlaneseq
      %v1574 = vshrl.u32 %v1573, 7
      %v1575 = vsub.s32 %v1572, %v1574
      %v1576 = vrot.slane %v1569, %v1575
      %v1577 = vcombine.low %v1552, %v1560
      %v1579 = vunpack.c.l.s4 1934713408
      %v1580 = vunpack.c.0.s8 %v1579
      %v1581 = vlaneseq
      %v1582 = vshrl.u32 %v1581, 7
      %v1583 = vsub.s32 %v1580, %v1582
      %v1584 = vrot.slane %v1577, %v1583
      %v1585 = vcombine.low %v1568, %v1576
      %v1587 = vunpack.c.l.s4 1934713408
      %v1588 = vunpack.c.0.s8 %v1587
      %v1589 = vlaneseq
      %v1590 = vshrl.u32 %v1589, 7
      %v1591 = vsub.s32 %v1588, %v1590
      %v1592 = vrot.slane %v1585, %v1591
      %v1593 = vcombine.low %v1584, %v1592
      %v1594 = vcombine.high %v1584, %v1592
      %v1595 = vpack.c.bf16 %v1593, %v1593
      %v1596 = vpack.c.bf16 %v1594, %v1594
      %v1598 = vsel %vm998, %v1491, 0
      %v1601 = vsel %vm998, %v1543, 0
      %1603 = vmatprep.subr.bf16.mxu0 0
      %1604 = vmatpush1.bf16.xpose.msra.mxu0 0
      %1605 = vmatprep.subr.bf16.mxu0 0
      %1606 = vmatpush1.bf16.xpose.msra.mxu0 0
      %1607 = vmatprep.subr.bf16.mxu0 0
      %1608 = vmatpush1.bf16.xpose.msra.mxu0 0
      %1609 = vmatprep.subr.bf16.mxu0 0
      %1610 = vmatpush1.bf16.xpose.msra.mxu0 0
      %1611 = vmatprep.subr.bf16.mxu0 0
      %1612 = vmatpush1.bf16.xpose.msra.mxu0 0
      %1613 = vmatprep.subr.bf16.mxu0 0
      %1614 = vmatpush1.bf16.xpose.msra.mxu0 0
      %1615 = vmatprep.subr.bf16.mxu0 0
      %1616 = vmatpush1.bf16.xpose.msra.mxu0 0
      %1617 = vmatprep.subr.bf16.mxu0 0
      %1618 = vmatpush1.bf16.xpose.msra.mxu0 %v1601
      %1619 = vmatprep.subr.bf16.mxu0 0
      %1620 = vmatpush2.bf16.xpose.msra.mxu0 0
      %1621 = vmatprep.subr.bf16.mxu0 0
      %1622 = vmatpush2.bf16.xpose.msra.mxu0 0
      %1623 = vmatprep.subr.bf16.mxu0 0
      %1624 = vmatpush2.bf16.xpose.msra.mxu0 0
      %1625 = vmatprep.subr.bf16.mxu0 0
      %1626 = vmatpush2.bf16.xpose.msra.mxu0 0
      %1627 = vmatprep.subr.bf16.mxu0 0
      %1628 = vmatpush2.bf16.xpose.msra.mxu0 0
      %1629 = vmatprep.subr.bf16.mxu0 0
      %1630 = vmatpush2.bf16.xpose.msra.mxu0 0
      %1631 = vmatprep.subr.bf16.mxu0 0
      %1632 = vmatpush2.bf16.xpose.msra.mxu0 0
      %1633 = vmatprep.subr.bf16.mxu0 0
      %1634 = vmatpush2.bf16.xpose.msra.mxu0 0
      %1635 = vmatprep.mubr.bf16.mxu0 0
      %1636 = vmatmul.mubr.bf16.gmra.mxu0 %v1598
      %v1637 = vpop.f32.mrf.mxu0
      %v1638 = vadd.f32 0.0, %v1637
      %v1639 = vpop.f32.mrf.mxu0
      %v1640 = vpop.f32.mrf.mxu0
      %v1641 = vpop.f32.mrf.mxu0
      %1642 = vdwg.mxu0
      %v1644 = vsel %vm998, %v1492, 0
      %v1647 = vsel %vm998, %v1544, 0
      %1649 = vmatprep.subr.bf16.mxu0 0
      %1650 = vmatpush1.bf16.xpose.msra.mxu0 0
      %1651 = vmatprep.subr.bf16.mxu0 0
      %1652 = vmatpush1.bf16.xpose.msra.mxu0 0
      %1653 = vmatprep.subr.bf16.mxu0 0
      %1654 = vmatpush1.bf16.xpose.msra.mxu0 0
      %1655 = vmatprep.subr.bf16.mxu0 0
      %1656 = vmatpush1.bf16.xpose.msra.mxu0 0
      %1657 = vmatprep.subr.bf16.mxu0 0
      %1658 = vmatpush1.bf16.xpose.msra.mxu0 0
      %1659 = vmatprep.subr.bf16.mxu0 0
      %1660 = vmatpush1.bf16.xpose.msra.mxu0 0
      %1661 = vmatprep.subr.bf16.mxu0 0
      %1662 = vmatpush1.bf16.xpose.msra.mxu0 0
      %1663 = vmatprep.subr.bf16.mxu0 0
      %1664 = vmatpush1.bf16.xpose.msra.mxu0 %v1647
      %1665 = vmatprep.subr.bf16.mxu0 0
      %1666 = vmatpush2.bf16.xpose.msra.mxu0 0
      %1667 = vmatprep.subr.bf16.mxu0 0
      %1668 = vmatpush2.bf16.xpose.msra.mxu0 0
      %1669 = vmatprep.subr.bf16.mxu0 0
      %1670 = vmatpush2.bf16.xpose.msra.mxu0 0
      %1671 = vmatprep.subr.bf16.mxu0 0
      %1672 = vmatpush2.bf16.xpose.msra.mxu0 0
      %1673 = vmatprep.subr.bf16.mxu0 0
      %1674 = vmatpush2.bf16.xpose.msra.mxu0 0
      %1675 = vmatprep.subr.bf16.mxu0 0
      %1676 = vmatpush2.bf16.xpose.msra.mxu0 0
      %1677 = vmatprep.subr.bf16.mxu0 0
      %1678 = vmatpush2.bf16.xpose.msra.mxu0 0
      %1679 = vmatprep.subr.bf16.mxu0 0
      %1680 = vmatpush2.bf16.xpose.msra.mxu0 0
      %1681 = vmatprep.mubr.bf16.mxu0 0
      %1682 = vmatmul.mubr.bf16.gmra.mxu0 %v1644
      %v1683 = vpop.f32.mrf.mxu0
      %v1684 = vadd.f32 0.0, %v1683
      %v1685 = vpop.f32.mrf.mxu0
      %v1686 = vpop.f32.mrf.mxu0
      %v1687 = vpop.f32.mrf.mxu0
      %1688 = vdwg.mxu0
      %v1689 = vmul.f32 %v1638, 0.25
      %v1690 = vmul.f32 %v1684, 0.25
      %v1692 = vlaneseq
      %v1693 = vshrl.u32 %v1692, 7
      %v1694 = vsub.s32 0, %v1693
      %v1695 = vrot.slane %v221, %v1694
      %v1697 = vadd.f32 %v1689, %v1695
      %v1698 = vadd.f32 %v1690, %v1695
      %v1699 = vsel %vm1101, %v1697, -inf
      %1700 = vmax.xlane.f32.xlu0 %v1699
      %v1701 = vpop.xlane.xlu0 %1700
      %v1702 = vsel %vm1101, %v1698, -inf
      %1703 = vmax.xlane.f32.xlu0 %v1702
      %v1704 = vpop.xlane.xlu0 %1703
      %v1705 = vsub.f32 %v1697, %v1701
      %v1706 = vsub.f32 %v1698, %v1704
      %v1707 = vmul.f32 %v1705, 1.442695
      %v1708 = vpow.pop %v1707
      %v1709 = vmul.f32 %v1706, 1.442695
      %v1710 = vpow.pop %v1709
      %v1711 = vsel %vm1101, %v1708, 0.0
      %1712 = vadd.xlane.f32.xlu0 %v1711
      %v1713 = vpop.xlane.xlu0 %1712
      %v1714 = vsel %vm1101, %v1710, 0.0
      %1715 = vadd.xlane.f32.xlu0 %v1714
      %v1716 = vpop.xlane.xlu0 %1715
      %v1717 = vrcp.pop %v1713
      %v1718 = vrcp.pop %v1716
      %v1719 = vmul.f32 %v1708, %v1717
      %v1720 = vmul.f32 %v1710, %v1718
      %v1721 = vpack.c.bf16 %v1719, %v1719
      %v1722 = vpack.c.bf16 %v1720, %v1720
      %v1724 = vsel %vm1101, %v1721, 0
      %v1727 = vsel %vm1129, %v1595, 0
      %1729 = vmatprep.subr.bf16.mxu0 0
      %1730 = vmatpush1.bf16.msra.mxu0 0
      %1731 = vmatprep.subr.bf16.mxu0 0
      %1732 = vmatpush1.bf16.msra.mxu0 0
      %1733 = vmatprep.subr.bf16.mxu0 0
      %1734 = vmatpush1.bf16.msra.mxu0 0
      %1735 = vmatprep.subr.bf16.mxu0 0
      %1736 = vmatpush1.bf16.msra.mxu0 0
      %1737 = vmatprep.subr.bf16.mxu0 0
      %1738 = vmatpush1.bf16.msra.mxu0 0
      %1739 = vmatprep.subr.bf16.mxu0 0
      %1740 = vmatpush1.bf16.msra.mxu0 0
      %1741 = vmatprep.subr.bf16.mxu0 0
      %1742 = vmatpush1.bf16.msra.mxu0 0
      %1743 = vmatprep.subr.bf16.mxu0 0
      %1744 = vmatpush1.bf16.msra.mxu0 %v1727
      %1745 = vmatprep.subr.bf16.mxu0 0
      %1746 = vmatpush2.bf16.msra.mxu0 0
      %1747 = vmatprep.subr.bf16.mxu0 0
      %1748 = vmatpush2.bf16.msra.mxu0 0
      %1749 = vmatprep.subr.bf16.mxu0 0
      %1750 = vmatpush2.bf16.msra.mxu0 0
      %1751 = vmatprep.subr.bf16.mxu0 0
      %1752 = vmatpush2.bf16.msra.mxu0 0
      %1753 = vmatprep.subr.bf16.mxu0 0
      %1754 = vmatpush2.bf16.msra.mxu0 0
      %1755 = vmatprep.subr.bf16.mxu0 0
      %1756 = vmatpush2.bf16.msra.mxu0 0
      %1757 = vmatprep.subr.bf16.mxu0 0
      %1758 = vmatpush2.bf16.msra.mxu0 0
      %1759 = vmatprep.subr.bf16.mxu0 0
      %1760 = vmatpush2.bf16.msra.mxu0 0
      %1761 = vmatprep.mubr.bf16.mxu0 0
      %1762 = vmatmul.mubr.bf16.gmra.mxu0 %v1724
      %v1763 = vpop.f32.mrf.mxu0
      %v1764 = vadd.f32 0.0, %v1763
      %v1765 = vpop.f32.mrf.mxu0
      %v1766 = vpop.f32.mrf.mxu0
      %v1767 = vpop.f32.mrf.mxu0
      %1768 = vdwg.mxu0
      %v1770 = vsel %vm1101, %v1722, 0
      %v1773 = vsel %vm1129, %v1596, 0
      %1775 = vmatprep.subr.bf16.mxu0 0
      %1776 = vmatpush1.bf16.msra.mxu0 0
      %1777 = vmatprep.subr.bf16.mxu0 0
      %1778 = vmatpush1.bf16.msra.mxu0 0
      %1779 = vmatprep.subr.bf16.mxu0 0
      %1780 = vmatpush1.bf16.msra.mxu0 0
      %1781 = vmatprep.subr.bf16.mxu0 0
      %1782 = vmatpush1.bf16.msra.mxu0 0
      %1783 = vmatprep.subr.bf16.mxu0 0
      %1784 = vmatpush1.bf16.msra.mxu0 0
      %1785 = vmatprep.subr.bf16.mxu0 0
      %1786 = vmatpush1.bf16.msra.mxu0 0
      %1787 = vmatprep.subr.bf16.mxu0 0
      %1788 = vmatpush1.bf16.msra.mxu0 0
      %1789 = vmatprep.subr.bf16.mxu0 0
      %1790 = vmatpush1.bf16.msra.mxu0 %v1773
      %1791 = vmatprep.subr.bf16.mxu0 0
      %1792 = vmatpush2.bf16.msra.mxu0 0
      %1793 = vmatprep.subr.bf16.mxu0 0
      %1794 = vmatpush2.bf16.msra.mxu0 0
      %1795 = vmatprep.subr.bf16.mxu0 0
      %1796 = vmatpush2.bf16.msra.mxu0 0
      %1797 = vmatprep.subr.bf16.mxu0 0
      %1798 = vmatpush2.bf16.msra.mxu0 0
      %1799 = vmatprep.subr.bf16.mxu0 0
      %1800 = vmatpush2.bf16.msra.mxu0 0
      %1801 = vmatprep.subr.bf16.mxu0 0
      %1802 = vmatpush2.bf16.msra.mxu0 0
      %1803 = vmatprep.subr.bf16.mxu0 0
      %1804 = vmatpush2.bf16.msra.mxu0 0
      %1805 = vmatprep.subr.bf16.mxu0 0
      %1806 = vmatpush2.bf16.msra.mxu0 0
      %1807 = vmatprep.mubr.bf16.mxu0 0
      %1808 = vmatmul.mubr.bf16.gmra.mxu0 %v1770
      %v1809 = vpop.f32.mrf.mxu0
      %v1810 = vadd.f32 0.0, %v1809
      %v1811 = vpop.f32.mrf.mxu0
      %v1812 = vpop.f32.mrf.mxu0
      %v1813 = vpop.f32.mrf.mxu0
      %1814 = vdwg.mxu0
      %v1815 = vcombine.high %v1764, 0.0
      %v1817 = vunpack.c.l.s4 1983009808
      %v1818 = vunpack.c.0.s8 %v1817
      %v1819 = vlaneseq
      %v1820 = vshrl.u32 %v1819, 7
      %v1821 = vsub.s32 %v1818, %v1820
      %v1822 = vrot.slane %v1764, %v1821
      %v1824 = vunpack.c.l.s4 1983009808
      %v1825 = vunpack.c.0.s8 %v1824
      %v1826 = vlaneseq
      %v1827 = vshrl.u32 %v1826, 7
      %v1828 = vsub.s32 %v1825, %v1827
      %v1829 = vrot.slane %v1815, %v1828
      %v1830 = vcombine.high %v1810, 0.0
      %v1832 = vunpack.c.l.s4 1983009808
      %v1833 = vunpack.c.0.s8 %v1832
      %v1834 = vlaneseq
      %v1835 = vshrl.u32 %v1834, 7
      %v1836 = vsub.s32 %v1833, %v1835
      %v1837 = vrot.slane %v1810, %v1836
      %v1839 = vunpack.c.l.s4 1983009808
      %v1840 = vunpack.c.0.s8 %v1839
      %v1841 = vlaneseq
      %v1842 = vshrl.u32 %v1841, 7
      %v1843 = vsub.s32 %v1840, %v1842
      %v1844 = vrot.slane %v1830, %v1843
      %v1845 = vcombine.low %v1822, %v1837
      %v1846 = vcombine.high %v1822, %v1837
      %v1848 = vunpack.c.l.s4 1934713408
      %v1849 = vunpack.c.0.s8 %v1848
      %v1850 = vlaneseq
      %v1851 = vshrl.u32 %v1850, 7
      %v1852 = vsub.s32 %v1849, %v1851
      %v1853 = vrot.slane %v1845, %v1852
      %v1855 = vunpack.c.l.s4 1934713408
      %v1856 = vunpack.c.0.s8 %v1855
      %v1857 = vlaneseq
      %v1858 = vshrl.u32 %v1857, 7
      %v1859 = vsub.s32 %v1856, %v1858
      %v1860 = vrot.slane %v1846, %v1859
      %v1861 = vcombine.low %v1829, %v1844
      %v1862 = vcombine.high %v1829, %v1844
      %v1864 = vunpack.c.l.s4 1934713408
      %v1865 = vunpack.c.0.s8 %v1864
      %v1866 = vlaneseq
      %v1867 = vshrl.u32 %v1866, 7
      %v1868 = vsub.s32 %v1865, %v1867
      %v1869 = vrot.slane %v1861, %v1868
      %v1871 = vunpack.c.l.s4 1934713408
      %v1872 = vunpack.c.0.s8 %v1871
      %v1873 = vlaneseq
      %v1874 = vshrl.u32 %v1873, 7
      %v1875 = vsub.s32 %v1872, %v1874
      %v1876 = vrot.slane %v1862, %v1875
      %v1877 = vcombine.high %v1853, 0.0
      %v1878 = vcombine.high %v1860, 0.0
      %v1879 = vcombine.high %v1869, 0.0
      %v1880 = vcombine.high %v1876, 0.0
      %v1881 = vcombine.low %v1853, %v1860
      %v1883 = vunpack.c.l.s4 1983009808
      %v1884 = vunpack.c.0.s8 %v1883
      %v1885 = vlaneseq
      %v1886 = vshrl.u32 %v1885, 7
      %v1887 = vsub.s32 %v1884, %v1886
      %v1888 = vrot.slane %v1881, %v1887
      %v1889 = vcombine.low %v1877, %v1878
      %v1891 = vunpack.c.l.s4 1983009808
      %v1892 = vunpack.c.0.s8 %v1891
      %v1893 = vlaneseq
      %v1894 = vshrl.u32 %v1893, 7
      %v1895 = vsub.s32 %v1892, %v1894
      %v1896 = vrot.slane %v1889, %v1895
      %v1897 = vcombine.low %v1869, %v1876
      %v1899 = vunpack.c.l.s4 1983009808
      %v1900 = vunpack.c.0.s8 %v1899
      %v1901 = vlaneseq
      %v1902 = vshrl.u32 %v1901, 7
      %v1903 = vsub.s32 %v1900, %v1902
      %v1904 = vrot.slane %v1897, %v1903
      %v1905 = vcombine.low %v1879, %v1880
      %v1907 = vunpack.c.l.s4 1983009808
      %v1908 = vunpack.c.0.s8 %v1907
      %v1909 = vlaneseq
      %v1910 = vshrl.u32 %v1909, 7
      %v1911 = vsub.s32 %v1908, %v1910
      %v1912 = vrot.slane %v1905, %v1911
      %v1913 = vcombine.low %v1888, %v1896
      %v1915 = vunpack.c.l.s4 1934713408
      %v1916 = vunpack.c.0.s8 %v1915
      %v1917 = vlaneseq
      %v1918 = vshrl.u32 %v1917, 7
      %v1919 = vsub.s32 %v1916, %v1918
      %v1920 = vrot.slane %v1913, %v1919
      %v1921 = vcombine.low %v1904, %v1912
      %v1923 = vunpack.c.l.s4 1934713408
      %v1924 = vunpack.c.0.s8 %v1923
      %v1925 = vlaneseq
      %v1926 = vshrl.u32 %v1925, 7
      %v1927 = vsub.s32 %v1924, %v1926
      %v1928 = vrot.slane %v1921, %v1927
      %v1929 = vcombine.low %v1920, %v1928
      %v1930 = vcombine.high %v1920, %v1928
      %1932 = vrot.lane.b32.xlu0 %v1930, 16
      %v1933 = vpop.permute.xlu0 %1932
      %v1935 = vsel %vm998, %v1929, %v1933
      %v1936 = vpack.c.bf16 %v1935, %v1935
      %v1937 = vld [vmem:[%s10] sm:$0xf]
      %v1938 = vld [vmem:[%s10 + $0x4] sm:$0xf]
      %v1939 = vld [vmem:[%s10 + $0x8] sm:$0xf]
      %v1940 = vld [vmem:[%s10 + $0xc] sm:$0xf]
      %v1941 = vld [vmem:[%s11] sm:$0x1]
      %v1943 = vlaneseq
      %v1944 = vshrl.u32 %v1943, 7
      %v1945 = vsub.s32 0, %v1944
      %v1946 = vrot.slane %v1941, %v1945
      %v1952 = vunpack.c.l.b16 %v1937
      %v1953 = vunpack.c.l.b16 %v1938
      %v1954 = vunpack.c.l.b16 %v1939
      %v1955 = vunpack.c.l.b16 %v1940
      %v1956 = vpack.c.b16 %v1953, %v1952
      %v1957 = vpack.c.b16 %v1955, %v1954
      %v1961 = vsel %vm174, %v1936, 0
      %1963 = vmatprep.subr.bf16.mxu0 0
      %1964 = vmatpush1.bf16.msra.mxu0 0
      %1965 = vmatprep.subr.bf16.mxu0 0
      %1966 = vmatpush1.bf16.msra.mxu0 0
      %1967 = vmatprep.subr.bf16.mxu0 0
      %1968 = vmatpush1.bf16.msra.mxu0 0
      %1969 = vmatprep.subr.bf16.mxu0 0
      %1970 = vmatpush1.bf16.msra.mxu0 0
      %1971 = vmatprep.subr.bf16.mxu0 0
      %1972 = vmatpush1.bf16.msra.mxu0 0
      %1973 = vmatprep.subr.bf16.mxu0 0
      %1974 = vmatpush1.bf16.msra.mxu0 0
      %1975 = vmatprep.subr.bf16.mxu0 0
      %1976 = vmatpush1.bf16.msra.mxu0 %v1957
      %1977 = vmatprep.subr.bf16.mxu0 0
      %1978 = vmatpush1.bf16.msra.mxu0 %v1956
      %1979 = vmatprep.subr.bf16.mxu0 0
      %1980 = vmatpush2.bf16.msra.mxu0 0
      %1981 = vmatprep.subr.bf16.mxu0 0
      %1982 = vmatpush2.bf16.msra.mxu0 0
      %1983 = vmatprep.subr.bf16.mxu0 0
      %1984 = vmatpush2.bf16.msra.mxu0 0
      %1985 = vmatprep.subr.bf16.mxu0 0
      %1986 = vmatpush2.bf16.msra.mxu0 0
      %1987 = vmatprep.subr.bf16.mxu0 0
      %1988 = vmatpush2.bf16.msra.mxu0 0
      %1989 = vmatprep.subr.bf16.mxu0 0
      %1990 = vmatpush2.bf16.msra.mxu0 0
      %1991 = vmatprep.subr.bf16.mxu0 0
      %1992 = vmatpush2.bf16.msra.mxu0 0
      %1993 = vmatprep.subr.bf16.mxu0 0
      %1994 = vmatpush2.bf16.msra.mxu0 0
      %1995 = vmatprep.mubr.bf16.mxu0 0
      %1996 = vmatmul.mubr.bf16.gmra.mxu0 %v1961
      %v1997 = vpop.f32.mrf.mxu0
      %v1998 = vadd.f32 %v1946, %v1997
      %v1999 = vpop.f32.mrf.mxu0
      %v2000 = vpop.f32.mrf.mxu0
      %v2001 = vpop.f32.mrf.mxu0
      %2002 = vdwg.mxu0
      %v2003 = vadd.f32 %v1998, %v217
      %v2004 = vld [vmem:[%s12] sm:$0x1]
      %v2005 = vld [vmem:[%s13] sm:$0x1]
      %v2006 = vsel %vm174, %v2003, 0.0
      %2007 = vadd.xlane.f32.xlu0 %v2006
      %v2008 = vpop.xlane.xlu0 %2007
      %v2009 = vmul.f32 %v2008, %v181
      %v2010 = vsub.f32 %v2003, %v2009
      %v2011 = vmul.f32 %v2010, %v2010
      %v2012 = vsel %vm174, %v2011, 0.0
      %2013 = vadd.xlane.f32.xlu0 %v2012
      %v2014 = vpop.xlane.xlu0 %2013
      %v2015 = vmul.f32 %v2014, %v181
      %v2016 = vadd.f32 %v2015, 1e-12
      %v2017 = vrsqrt.pop %v2016
      %v2018 = vmul.f32 %v2010, %v2017
      %v2020 = vlaneseq
      %v2021 = vshrl.u32 %v2020, 7
      %v2022 = vsub.s32 0, %v2021
      %v2023 = vrot.slane %v2004, %v2022
      %v2025 = vmul.f32 %v2018, %v2023
      %v2027 = vlaneseq
      %v2028 = vshrl.u32 %v2027, 7
      %v2029 = vsub.s32 0, %v2028
      %v2030 = vrot.slane %v2005, %v2029
      %v2032 = vadd.f32 %v2025, %v2030
      %s2033 = scalar_lea.vmem [#allocation2], 8
      %2034 = vst.msk [vmem:[%s2033] sm:$0xff] %vm174, %v2032
      %v2035 = vpack.c.bf16 %v2032, %v2032
      %s2036 = scalar_lea.vmem [#allocation3], 4
      %2037 = vst.msk [vmem:[%s2036] sm:$0xf] %vm1439, %v2035
    $region117: #{tpu_custom_call.1} parent=1 // pred_fallthru
      _
    %v2038 = vld [vmem:[#allocation3] sm:$0xf]
    %v2039 = vld [vmem:[#allocation3 + $0x4] sm:$0xf]
    %v2040 = vld [vmem:[#allocation17] sm:$0xf]
    %v2041 = vld [vmem:[#allocation17 + $0x4] sm:$0xf]
    %v2042 = vld [vmem:[#allocation17 + $0x8] sm:$0xf]
    %v2043 = vld [vmem:[#allocation17 + $0xc] sm:$0xf]
    %v2044 = vld [vmem:[%s15] sm:$0x1]
    %v2046 = vlaneseq
    %v2047 = vshrl.u32 %v2046, 7
    %v2048 = vsub.s32 0, %v2047
    %v2049 = vrot.slane %v2044, %v2048
    %v2053 = vunpack.c.l.b16 %v2038
    %v2054 = vunpack.c.l.b16 %v2039
    %v2055 = vpack.c.b16 %v2054, %v2053
    %v2060 = vunpack.c.l.b16 %v2040
    %v2061 = vunpack.c.l.b16 %v2041
    %v2062 = vunpack.c.l.b16 %v2042
    %v2063 = vunpack.c.l.b16 %v2043
    %v2064 = vpack.c.b16 %v2061, %v2060
    %v2065 = vpack.c.b16 %v2063, %v2062
    %vm2068 = vcmask 261120
    %v2070 = vsel %vm2068, %v2055, 0
    %2072 = vmatprep.subr.bf16.mxu0 0
    %2073 = vmatpush1.bf16.msra.mxu0 0
    %2074 = vmatprep.subr.bf16.mxu0 0
    %2075 = vmatpush1.bf16.msra.mxu0 0
    %2076 = vmatprep.subr.bf16.mxu0 0
    %2077 = vmatpush1.bf16.msra.mxu0 0
    %2078 = vmatprep.subr.bf16.mxu0 0
    %2079 = vmatpush1.bf16.msra.mxu0 0
    %2080 = vmatprep.subr.bf16.mxu0 0
    %2081 = vmatpush1.bf16.msra.mxu0 0
    %2082 = vmatprep.subr.bf16.mxu0 0
    %2083 = vmatpush1.bf16.msra.mxu0 0
    %2084 = vmatprep.subr.bf16.mxu0 0
    %2085 = vmatpush1.bf16.msra.mxu0 %v2065
    %2086 = vmatprep.subr.bf16.mxu0 0
    %2087 = vmatpush1.bf16.msra.mxu0 %v2064
    %2088 = vmatprep.subr.bf16.mxu0 0
    %2089 = vmatpush2.bf16.msra.mxu0 0
    %2090 = vmatprep.subr.bf16.mxu0 0
    %2091 = vmatpush2.bf16.msra.mxu0 0
    %2092 = vmatprep.subr.bf16.mxu0 0
    %2093 = vmatpush2.bf16.msra.mxu0 0
    %2094 = vmatprep.subr.bf16.mxu0 0
    %2095 = vmatpush2.bf16.msra.mxu0 0
    %2096 = vmatprep.subr.bf16.mxu0 0
    %2097 = vmatpush2.bf16.msra.mxu0 0
    %2098 = vmatprep.subr.bf16.mxu0 0
    %2099 = vmatpush2.bf16.msra.mxu0 0
    %2100 = vmatprep.subr.bf16.mxu0 0
    %2101 = vmatpush2.bf16.msra.mxu0 0
    %2102 = vmatprep.subr.bf16.mxu0 0
    %2103 = vmatpush2.bf16.msra.mxu0 0
    %2104 = vmatprep.mubr.bf16.mxu0 0
    %2105 = vmatmul.mubr.bf16.gmra.mxu0 %v2070
    %v2106 = vpop.f32.mrf.mxu0
    %v2107 = vadd.f32 %v2049, %v2106
    %v2108 = vpop.f32.mrf.mxu0
    %v2109 = vpop.f32.mrf.mxu0
    %v2110 = vadd.f32 %v2049, %v2109
    %v2111 = vpop.f32.mrf.mxu0
    %2112 = vdwg.mxu0
    %v2113 = vmul.f32 %v2107, 0.5
    %v2114 = vmul.f32 %v2110, 0.5
    %v2115 = vmul.f32 %v2107, 0.70710677
    %v2116 = vmul.f32 %v2110, 0.70710677
    %v2117 = verf.f32.pop %v2115
    %v2118 = verf.f32.pop %v2116
    %v2119 = vadd.f32 %v2117, 1.0
    %v2120 = vadd.f32 %v2118, 1.0
    %v2121 = vmul.f32 %v2113, %v2119
    %v2122 = vmul.f32 %v2114, %v2120
    %v2123 = vpack.c.bf16 %v2122, %v2121
    %v2124 = vld [vmem:[%s16] sm:$0xf]
    %v2125 = vld [vmem:[%s16 + $0x4] sm:$0xf]
    %v2126 = vld [vmem:[%s16 + $0x8] sm:$0xf]
    %v2127 = vld [vmem:[%s16 + $0xc] sm:$0xf]
    %v2128 = vld [vmem:[%s16 + $0x10] sm:$0xf]
    %v2129 = vld [vmem:[%s16 + $0x14] sm:$0xf]
    %v2130 = vld [vmem:[%s16 + $0x18] sm:$0xf]
    %v2131 = vld [vmem:[%s16 + $0x1c] sm:$0xf]
    %v2140 = vunpack.c.l.b16 %v2124
    %v2141 = vunpack.c.l.b16 %v2125
    %v2142 = vunpack.c.l.b16 %v2126
    %v2143 = vunpack.c.l.b16 %v2127
    %v2144 = vunpack.c.l.b16 %v2128
    %v2145 = vunpack.c.l.b16 %v2129
    %v2146 = vunpack.c.l.b16 %v2130
    %v2147 = vunpack.c.l.b16 %v2131
    %v2148 = vpack.c.b16 %v2141, %v2140
    %v2149 = vpack.c.b16 %v2143, %v2142
    %v2150 = vpack.c.b16 %v2145, %v2144
    %v2151 = vpack.c.b16 %v2147, %v2146
    %vm2156 = vcmask 523264
    %v2158 = vsel %vm2156, %v2123, 0
    %2160 = vmatprep.subr.bf16.mxu0 0
    %2161 = vmatpush1.bf16.msra.mxu0 0
    %2162 = vmatprep.subr.bf16.mxu0 0
    %2163 = vmatpush1.bf16.msra.mxu0 0
    %2164 = vmatprep.subr.bf16.mxu0 0
    %2165 = vmatpush1.bf16.msra.mxu0 0
    %2166 = vmatprep.subr.bf16.mxu0 0
    %2167 = vmatpush1.bf16.msra.mxu0 0
    %2168 = vmatprep.subr.bf16.mxu0 0
    %2169 = vmatpush1.bf16.msra.mxu0 %v2151
    %2170 = vmatprep.subr.bf16.mxu0 0
    %2171 = vmatpush1.bf16.msra.mxu0 %v2150
    %2172 = vmatprep.subr.bf16.mxu0 0
    %2173 = vmatpush1.bf16.msra.mxu0 %v2149
    %2174 = vmatprep.subr.bf16.mxu0 0
    %2175 = vmatpush1.bf16.msra.mxu0 %v2148
    %2176 = vmatprep.subr.bf16.mxu0 0
    %2177 = vmatpush2.bf16.msra.mxu0 0
    %2178 = vmatprep.subr.bf16.mxu0 0
    %2179 = vmatpush2.bf16.msra.mxu0 0
    %2180 = vmatprep.subr.bf16.mxu0 0
    %2181 = vmatpush2.bf16.msra.mxu0 0
    %2182 = vmatprep.subr.bf16.mxu0 0
    %2183 = vmatpush2.bf16.msra.mxu0 0
    %2184 = vmatprep.subr.bf16.mxu0 0
    %2185 = vmatpush2.bf16.msra.mxu0 0
    %2186 = vmatprep.subr.bf16.mxu0 0
    %2187 = vmatpush2.bf16.msra.mxu0 0
    %2188 = vmatprep.subr.bf16.mxu0 0
    %2189 = vmatpush2.bf16.msra.mxu0 0
    %2190 = vmatprep.subr.bf16.mxu0 0
    %2191 = vmatpush2.bf16.msra.mxu0 0
    %2192 = vmatprep.mubr.bf16.mxu0 0
    %2193 = vmatmul.mubr.bf16.gmra.mxu0 %v2158
    %v2194 = vpop.f32.mrf.mxu0
    %v2195 = vadd.f32 0.0, %v2194
    %v2196 = vpop.f32.mrf.mxu0
    %v2197 = vpop.f32.mrf.mxu0
    %v2198 = vadd.f32 0.0, %v2197
    %v2199 = vpop.f32.mrf.mxu0
    %2200 = vdwg.mxu0
    // Predicated region
    $region118: #{tpu_custom_call.1} parent=1 // pred_check
      %p2201 = pneg %p166
    $region119: #{tpu_custom_call.1} parent=1 // pred_check_branch
      %2203 = sbr.rel (%p2201) target = $region121
    $region120: #{tpu_custom_call.1} parent=1 // pred_region
      %2204 = vst.msk [vmem:[#allocation4] sm:$0xff] %vm2068, %v2195
      %2205 = vst.msk [vmem:[#allocation4 + $0x8] sm:$0xff] %vm2068, %v2198
    $region121: #{tpu_custom_call.1} parent=1 // pred_fallthru
      _
    %p2206 = scmp.gt.s32.totalorder 0, 0
    // Predicated region
    $region122: #{tpu_custom_call.1} parent=1 // pred_check
      %p2207 = pneg %p2206
    $region123: #{tpu_custom_call.1} parent=1 // pred_check_branch
      %2209 = sbr.rel (%p2207) target = $region125
    $region124: #{tpu_custom_call.1} parent=1 // pred_region
      %v2210 = vld [vmem:[#allocation4] sm:$0xff]
      %v2211 = vld [vmem:[#allocation4 + $0x8] sm:$0xff]
      %v2212 = vadd.f32 %v2210, %v2195
      %v2213 = vadd.f32 %v2211, %v2198
      %2214 = vst.msk [vmem:[#allocation4] sm:$0xff] %vm2068, %v2212
      %2215 = vst.msk [vmem:[#allocation4 + $0x8] sm:$0xff] %vm2068, %v2213
    $region125: #{tpu_custom_call.1} parent=1 // pred_fallthru
      _
    // Predicated region
    $region126: #{tpu_custom_call.1} parent=1 // pred_check
      %p2216 = pneg %p166
    $region127: #{tpu_custom_call.1} parent=1 // pred_check_branch
      %2218 = sbr.rel (%p2216) target = $region129
    $region128: #{tpu_custom_call.1} parent=1 // pred_region
      %v2219 = vld [vmem:[#allocation4] sm:$0xff]
      %v2220 = vld [vmem:[#allocation4 + $0x8] sm:$0xff]
      %v2221 = vld [vmem:[%s17] sm:$0x1]
      %v2223 = vlaneseq
      %v2224 = vshrl.u32 %v2223, 7
      %v2225 = vsub.s32 0, %v2224
      %v2226 = vrot.slane %v2221, %v2225
      %v2228 = vadd.f32 %v2219, %v2226
      %v2229 = vadd.f32 %v2220, %v2226
      %v2230 = vld [vmem:[#allocation2] sm:$0xff]
      %v2231 = vld [vmem:[#allocation2 + $0x8] sm:$0xff]
      %v2232 = vadd.f32 %v2228, %v2230
      %v2233 = vadd.f32 %v2229, %v2231
      %v2234 = vld [vmem:[%s18] sm:$0x1]
      %v2235 = vld [vmem:[%s19] sm:$0x1]
      %v2236 = vsel %vm2068, %v2232, 0.0
      %2237 = vadd.xlane.f32.xlu0 %v2236
      %v2238 = vpop.xlane.xlu0 %2237
      %v2239 = vsel %vm2068, %v2233, 0.0
      %2240 = vadd.xlane.f32.xlu0 %v2239
      %v2241 = vpop.xlane.xlu0 %2240
      %v2242 = vrcp.pop 32.0
      %v2243 = vmul.f32 %v2238, %v2242
      %v2244 = vmul.f32 %v2241, %v2242
      %v2245 = vsub.f32 %v2232, %v2243
      %v2246 = vsub.f32 %v2233, %v2244
      %v2247 = vmul.f32 %v2245, %v2245
      %v2248 = vmul.f32 %v2246, %v2246
      %v2249 = vsel %vm2068, %v2247, 0.0
      %2250 = vadd.xlane.f32.xlu0 %v2249
      %v2251 = vpop.xlane.xlu0 %2250
      %v2252 = vsel %vm2068, %v2248, 0.0
      %2253 = vadd.xlane.f32.xlu0 %v2252
      %v2254 = vpop.xlane.xlu0 %2253
      %v2255 = vmul.f32 %v2251, %v2242
      %v2256 = vmul.f32 %v2254, %v2242
      %v2257 = vadd.f32 %v2255, 1e-12
      %v2258 = vadd.f32 %v2256, 1e-12
      %v2259 = vrsqrt.pop %v2257
      %v2260 = vrsqrt.pop %v2258
      %v2261 = vmul.f32 %v2245, %v2259
      %v2262 = vmul.f32 %v2246, %v2260
      %v2264 = vlaneseq
      %v2265 = vshrl.u32 %v2264, 7
      %v2266 = vsub.s32 0, %v2265
      %v2267 = vrot.slane %v2234, %v2266
      %v2269 = vmul.f32 %v2261, %v2267
      %v2270 = vmul.f32 %v2262, %v2267
      %v2272 = vlaneseq
      %v2273 = vshrl.u32 %v2272, 7
      %v2274 = vsub.s32 0, %v2273
      %v2275 = vrot.slane %v2235, %v2274
      %v2277 = vadd.f32 %v2269, %v2275
      %v2278 = vadd.f32 %v2270, %v2275
      %v2279 = vpack.c.bf16 %v2277, %v2277
      %v2280 = vpack.c.bf16 %v2278, %v2278
      %vm2281 = vcmask 257024
      %2282 = vst.msk [vmem:[#allocation19] sm:$0xf] %vm2281, %v2279
      %2283 = vst.msk [vmem:[#allocation19 + $0x4] sm:$0xf] %vm2281, %v2280
    $region129: #{tpu_custom_call.1} parent=1 // pred_fallthru
      _
    // Predicated region
    $region130: #{tpu_custom_call.1} parent=1 // pred_check
      _
    $region131: #{tpu_custom_call.1} parent=1 // pred_check_branch
      %2285 = sbr.rel (0) target = $region133
    $region132: #{tpu_custom_call.1} parent=1 // pred_region
      %s2287 = ssub.s32 128, 128
      %2288 = vsyncadd [#allocation7], %s2287
      %s2289 = sshll.u32 [#allocation19], 4
      %s2290 = int_to_ptr.vmem [resolvable:$true] %s2289
      %2295 = dma.vmem_to_hbm [thread:$0]  %s2290, 128, %s20, [#allocation7], 64, 64, 4
    $region133: #{tpu_custom_call.1} parent=1 // pred_fallthru
      _
    // Predicated region
    $region134: #{tpu_custom_call.1} parent=1 // pred_check
      _
    $region135: #{tpu_custom_call.1} parent=1 // pred_check_branch
      %2297 = sbr.rel (0) target = $region137
    $region136: #{tpu_custom_call.1} parent=1 // pred_region
      %2298 = dma.done [#allocation7], 128
    $region137: #{tpu_custom_call.1} parent=1 // pred_fallthru
      _
    %2299 = vsyncpa [#allocation6], 1
    %2300 = vsyncpa [#allocation9], 1
    %2301 = vsyncpa [#allocation12], 1
    %2302 = vsyncpa [#allocation15], 1
    %2303 = vsyncpa [#allocation18], 1
    %2304 = vsyncpa [#allocation7], 1

</llo_original>
